<compile_context>
chip_gen: v6e
topology: v6e:2x2x1
jax: 0.10.0
libtpu: 0.0.40
codegen_flags: <defaults>
</compile_context>

<pallas_src>
import jax
import jax.numpy as jnp
from jax import lax
from jax.experimental import pallas as pl
from jax.experimental.pallas import tpu as pltpu

H1 = 512
H2 = 256
H3 = 1

# A·Bᵀ dimension numbers (contract dim 1 of both operands), as used by the
# reference flash-attention Pallas kernel for q·kᵀ.
_NT_DIMS = (((1,), (1,)), ((), ()))


def mlp_kernel(x_ref, w1_ref, b1_ref, w2_ref, b2_ref, w3_ref, b3_ref, o_ref):
    cdt = w1_ref.dtype  # compute dtype for MXU operands (f32 or bf16)

    # Layer 1: h1[f, b] = sum_d W1[f, d] * x[b, d]   -> (H1, tile_b)
    h1 = lax.dot_general(w1_ref[...], x_ref[...], _NT_DIMS,
                         preferred_element_type=jnp.float32)
    h1 = jnp.maximum(h1 + b1_ref[...], 0.0)          # bias (H1,1) lane-broadcast

    # Layer 2: (H2, H1) @ (H1, tile_b) -> (H2, tile_b)
    h2 = jnp.dot(w2_ref[...], h1.astype(cdt), preferred_element_type=jnp.float32)
    h2 = jnp.maximum(h2 + b2_ref[...], 0.0)

    # Layer 3: (1, H2) @ (H2, tile_b) -> (1, tile_b)  (lane-dense output row)
    h3 = jnp.dot(w3_ref[...], h2.astype(cdt), preferred_element_type=jnp.float32)
    h3 = jnp.maximum(h3 + b3_ref[...], 0.0)

    o_ref[...] = h3.astype(o_ref.dtype)


def _round_up(n, m):
    return ((n + m - 1) // m) * m


def mlp_forward(x, w1, b1, w2, b2, w3, b3, *, tile_b=512,
                compute_dtype=jnp.float32):
    """x: (B, D) f32.  w*: PyTorch (out, in) layout.  b*: (out, 1) columns."""
    B, D = x.shape
    assert w1.shape == (H1, D) and b1.shape == (H1, 1)
    assert w2.shape == (H2, H1) and b2.shape == (H2, 1)
    assert w3.shape == (H3, H2) and b3.shape == (H3, 1)

    # Clamp the batch tile: keep it a multiple of 128 (lane-dense output block)
    # and never larger than the (padded) batch itself.
    tile_b = max(128, min(int(tile_b), _round_up(B, 128)))
    tile_b = _round_up(tile_b, 128)
    B_pad = _round_up(B, tile_b)
    if B_pad != B:
        x = jnp.pad(x, ((0, B_pad - B), (0, 0)))  # zero rows; sliced off below

    # Optional bf16 operands for the matmuls (fp32 accumulation preserved).
    x_c = x.astype(compute_dtype)
    w1_c = w1.astype(compute_dtype)
    w2_c = w2.astype(compute_dtype)
    w3_c = w3.astype(compute_dtype)

    grid = (B_pad // tile_b,)

    in_specs = [
        pl.BlockSpec((tile_b, D), lambda i: (i, 0)),   # x   — tiled over batch
        pl.BlockSpec((H1, D),     lambda i: (0, 0)),   # W1  — resident (const idx)
        pl.BlockSpec((H1, 1),     lambda i: (0, 0)),   # b1
        pl.BlockSpec((H2, H1),    lambda i: (0, 0)),   # W2
        pl.BlockSpec((H2, 1),     lambda i: (0, 0)),   # b2
        pl.BlockSpec((H3, H2),    lambda i: (0, 0)),   # W3
        pl.BlockSpec((H3, 1),     lambda i: (0, 0)),   # b3
    ]
    # Lane-dense output: one (1, tile_b) row per grid step.
    out_spec = pl.BlockSpec((H3, tile_b), lambda i: (0, i))

    operands = (x_c, w1_c, b1, w2_c, b2, w3_c, b3)
    flops = 2 * B_pad * (D * H1 + H1 * H2 + H2 * H3)
    bytes_accessed = sum(int(a.size) * a.dtype.itemsize for a in operands) \
        + B_pad * H3 * 4
    cost = pl.CostEstimate(flops=flops, transcendentals=0,
                           bytes_accessed=bytes_accessed)

    out_t = pl.pallas_call(
        mlp_kernel,
        out_shape=jax.ShapeDtypeStruct((H3, B_pad), jnp.float32),
        grid=grid,
        in_specs=in_specs,
        out_specs=out_spec,
        compiler_params=pltpu.CompilerParams(
            dimension_semantics=("parallel",),
        ),
        cost_estimate=cost,
    )(*operands)

    # (1, B_pad) -> (B, 1); trivial XLA-side layout plumbing.
    return out_t.reshape(B_pad, H3)[:B]


def init_params(key, input_dim):
    """Deterministic init matching nn.Linear; PyTorch (out, in) weight layout."""
    ks = jax.random.split(key, 6)

    def linear_init(kw, kb, fan_in, fan_out):
        bound = 1.0 / jnp.sqrt(jnp.float32(fan_in))
        w = jax.random.uniform(kw, (fan_out, fan_in), jnp.float32, -bound, bound)
        b = jax.random.uniform(kb, (fan_out, 1), jnp.float32, -bound, bound)
        return w, b

    w1, b1 = linear_init(ks[0], ks[1], input_dim, H1)
    w2, b2 = linear_init(ks[2], ks[3], H1, H2)
    w3, b3 = linear_init(ks[4], ks[5], H2, H3)
    return w1, b1, w2, b2, w3, b3


def reference_forward(x, w1, b1, w2, b2, w3, b3):
    h = jnp.maximum(x @ w1.T + b1.T, 0.0)
    h = jnp.maximum(h @ w2.T + b2.T, 0.0)
    return jnp.maximum(h @ w3.T + b3.T, 0.0)


if __name__ == "__main__":
    key = jax.random.PRNGKey(0)
    k_x, k_x2, k_p = jax.random.split(key, 3)

    input_dim = 32
    params = init_params(k_p, input_dim)

    # Small batch (exercises zero-padding up to one 128-row tile).
    x_small = jax.random.normal(k_x, (16, input_dim), dtype=jnp.float32)
    out_small = jax.block_until_ready(mlp_forward(x_small, *params))
    ref_small = reference_forward(x_small, *params)
    assert out_small.shape == (16, 1), out_small.shape
    assert jnp.allclose(out_small, ref_small, atol=1e-4, rtol=1e-4), \
        "mismatch vs JAX reference (small batch)"

    # Larger, non-multiple batch (exercises multi-step grid + tail padding).
    x_big = jax.random.normal(k_x2, (1000, input_dim), dtype=jnp.float32)
    out_big = jax.block_until_ready(mlp_forward(x_big, *params))
    ref_big = reference_forward(x_big, *params)
    assert out_big.shape == (1000, 1), out_big.shape
    assert jnp.allclose(out_big, ref_big, atol=1e-4, rtol=1e-4), \
        "mismatch vs JAX reference (large batch)"

    print("KERNEL_OK")
</pallas_src>

<mosaic_0001>
module attributes {stable_mosaic.version = 11 : i64} {
  func.func @mlp_kernel(%arg0: i32, %arg1: memref<128x32xf32, #tpu.memory_space<vmem>>, %arg2: memref<512x32xf32, #tpu.memory_space<vmem>>, %arg3: memref<512x1xf32, #tpu.memory_space<vmem>>, %arg4: memref<256x512xf32, #tpu.memory_space<vmem>>, %arg5: memref<256x1xf32, #tpu.memory_space<vmem>>, %arg6: memref<1x256xf32, #tpu.memory_space<vmem>>, %arg7: memref<1x1xf32, #tpu.memory_space<vmem>>, %arg8: memref<1x128xf32, #tpu.memory_space<vmem>>) attributes {dimension_semantics = [#tpu.dimension_semantics<parallel>], iteration_bounds = array<i64: 1>, scalar_prefetch = 0 : i64, scratch_operands = 0 : i64, tpu.core_type = #tpu.core_type<tc>, window_params = [{transform_indices = @transform_0, window_bounds = array<i64: 128, 32>}, {pipeline_mode = #tpu.pipeline_mode<synchronous>, transform_indices = @transform_1, window_bounds = array<i64: 512, 32>}, {pipeline_mode = #tpu.pipeline_mode<synchronous>, transform_indices = @transform_2, window_bounds = array<i64: 512, 1>}, {pipeline_mode = #tpu.pipeline_mode<synchronous>, transform_indices = @transform_3, window_bounds = array<i64: 256, 512>}, {pipeline_mode = #tpu.pipeline_mode<synchronous>, transform_indices = @transform_4, window_bounds = array<i64: 256, 1>}, {pipeline_mode = #tpu.pipeline_mode<synchronous>, transform_indices = @transform_5, window_bounds = array<i64: 1, 256>}, {pipeline_mode = #tpu.pipeline_mode<synchronous>, transform_indices = @transform_6, window_bounds = array<i64: 1, 1>}, {transform_indices = @transform_7, window_bounds = array<i64: 1, 128>}]} {
    %c0 = arith.constant 0 : index
    %c0_0 = arith.constant 0 : index
    %0 = vector.load %arg2[%c0, %c0_0] : memref<512x32xf32, #tpu.memory_space<vmem>>, vector<512x32xf32>
    %c0_1 = arith.constant 0 : index
    %c0_2 = arith.constant 0 : index
    %1 = vector.load %arg1[%c0_1, %c0_2] : memref<128x32xf32, #tpu.memory_space<vmem>>, vector<128x32xf32>
    %cst = arith.constant dense<0.000000e+00> : vector<512x128xf32>
    %2 = tpu.matmul %0, %1, %cst {dimension_numbers = #tpu.dot_dimension_numbers<[1], [1], [0], [0], [0, 0, 1, 0], [], []>} : vector<512x32xf32>, vector<128x32xf32>, vector<512x128xf32> -> vector<512x128xf32>
    %c0_3 = arith.constant 0 : index
    %c0_4 = arith.constant 0 : index
    %3 = vector.load %arg3[%c0_3, %c0_4] : memref<512x1xf32, #tpu.memory_space<vmem>>, vector<512x1xf32>
    %4 = vector.broadcast %3 : vector<512x1xf32> to vector<512x128xf32>
    %5 = arith.addf %2, %4 : vector<512x128xf32>
    %cst_5 = arith.constant 0.000000e+00 : f32
    %6 = vector.broadcast %cst_5 : f32 to vector<512x128xf32>
    %7 = arith.maximumf %5, %6 : vector<512x128xf32>
    %c0_6 = arith.constant 0 : index
    %c0_7 = arith.constant 0 : index
    %8 = vector.load %arg4[%c0_6, %c0_7] : memref<256x512xf32, #tpu.memory_space<vmem>>, vector<256x512xf32>
    %cst_8 = arith.constant dense<0.000000e+00> : vector<256x128xf32>
    %9 = tpu.matmul %8, %7, %cst_8 {dimension_numbers = #tpu.dot_dimension_numbers<[1], [0], [0], [1], [0, 0, 1, 1], [], []>} : vector<256x512xf32>, vector<512x128xf32>, vector<256x128xf32> -> vector<256x128xf32>
    %c0_9 = arith.constant 0 : index
    %c0_10 = arith.constant 0 : index
    %10 = vector.load %arg5[%c0_9, %c0_10] : memref<256x1xf32, #tpu.memory_space<vmem>>, vector<256x1xf32>
    %11 = vector.broadcast %10 : vector<256x1xf32> to vector<256x128xf32>
    %12 = arith.addf %9, %11 : vector<256x128xf32>
    %cst_11 = arith.constant 0.000000e+00 : f32
    %13 = vector.broadcast %cst_11 : f32 to vector<256x128xf32>
    %14 = arith.maximumf %12, %13 : vector<256x128xf32>
    %c0_12 = arith.constant 0 : index
    %c0_13 = arith.constant 0 : index
    %15 = vector.load %arg6[%c0_12, %c0_13] : memref<1x256xf32, #tpu.memory_space<vmem>>, vector<1x256xf32>
    %cst_14 = arith.constant dense<0.000000e+00> : vector<1x128xf32>
    %16 = tpu.matmul %15, %14, %cst_14 {dimension_numbers = #tpu.dot_dimension_numbers<[1], [0], [0], [1], [0, 0, 1, 1], [], []>} : vector<1x256xf32>, vector<256x128xf32>, vector<1x128xf32> -> vector<1x128xf32>
    %c0_15 = arith.constant 0 : index
    %c0_16 = arith.constant 0 : index
    %17 = vector.load %arg7[%c0_15, %c0_16] : memref<1x1xf32, #tpu.memory_space<vmem>>, vector<1x1xf32>
    %18 = vector.broadcast %17 : vector<1x1xf32> to vector<1x128xf32>
    %19 = arith.addf %16, %18 : vector<1x128xf32>
    %cst_17 = arith.constant 0.000000e+00 : f32
    %20 = vector.broadcast %cst_17 : f32 to vector<1x128xf32>
    %21 = arith.maximumf %19, %20 : vector<1x128xf32>
    %c0_18 = arith.constant 0 : index
    %c0_19 = arith.constant 0 : index
    %22 = vector.load %arg8[%c0_18, %c0_19] : memref<1x128xf32, #tpu.memory_space<vmem>>, vector<1x128xf32>
    tpu.vector_store %arg8[%c0_18, %c0_19], %21 {strides = array<i32>} : memref<1x128xf32, #tpu.memory_space<vmem>>, vector<1x128xf32>,
    return
  }
  func.func @transform_0(%arg0: i32) -> (i32, i32) {
    %c0_i32 = arith.constant 0 : i32
    %c0_i32_0 = arith.constant 0 : i32
    return %arg0, %c0_i32 : i32, i32
  }
  func.func @transform_1(%arg0: i32) -> (i32, i32) {
    %c0_i32 = arith.constant 0 : i32
    %c0_i32_0 = arith.constant 0 : i32
    %c0_i32_1 = arith.constant 0 : i32
    return %c0_i32, %c0_i32_0 : i32, i32
  }
  func.func @transform_2(%arg0: i32) -> (i32, i32) {
    %c0_i32 = arith.constant 0 : i32
    %c0_i32_0 = arith.constant 0 : i32
    %c0_i32_1 = arith.constant 0 : i32
    return %c0_i32, %c0_i32_0 : i32, i32
  }
  func.func @transform_3(%arg0: i32) -> (i32, i32) {
    %c0_i32 = arith.constant 0 : i32
    %c0_i32_0 = arith.constant 0 : i32
    %c0_i32_1 = arith.constant 0 : i32
    return %c0_i32, %c0_i32_0 : i32, i32
  }
  func.func @transform_4(%arg0: i32) -> (i32, i32) {
    %c0_i32 = arith.constant 0 : i32
    %c0_i32_0 = arith.constant 0 : i32
    %c0_i32_1 = arith.constant 0 : i32
    return %c0_i32, %c0_i32_0 : i32, i32
  }
  func.func @transform_5(%arg0: i32) -> (i32, i32) {
    %c0_i32 = arith.constant 0 : i32
    %c0_i32_0 = arith.constant 0 : i32
    %c0_i32_1 = arith.constant 0 : i32
    return %c0_i32, %c0_i32_0 : i32, i32
  }
  func.func @transform_6(%arg0: i32) -> (i32, i32) {
    %c0_i32 = arith.constant 0 : i32
    %c0_i32_0 = arith.constant 0 : i32
    %c0_i32_1 = arith.constant 0 : i32
    return %c0_i32, %c0_i32_0 : i32, i32
  }
  func.func @transform_7(%arg0: i32) -> (i32, i32) {
    %c0_i32 = arith.constant 0 : i32
    %c0_i32_0 = arith.constant 0 : i32
    return %c0_i32, %arg0 : i32, i32
  }
}

</mosaic_0001>

<llo_original>
// kernel: tpu_custom_call.1
$region0: #{tpu_custom_call.1}
  #allocation0 [shape = 'u32[]', space=smem, size = 0x4, offset = 0x4, fixed_abs, tag = 'smem constant byte address 0x4 - core index']
  #allocation1 [shape = 'u32[144,128]{1,0:T(1,128)}', space=vmem, size = 0x12000, scoped, tag = 'internal scratch']
  #allocation2 [shape = 'f32[1,1]{1,0:T(1,128)S(1)}', space=vmem, size = 0x200, scoped, tag = 'scoped memory for tpu_custom_call.1']
  %s0 = inlined_call_operand.vmem [shape: f32[128,32], index: 0, kind: input, shape index: {}]
  %s1 = inlined_call_operand.vmem [shape: f32[512,32], index: 1, kind: input, shape index: {}]
  %s2 = inlined_call_operand.vmem [shape: f32[512,1], index: 2, kind: input, shape index: {}]
  %s3 = inlined_call_operand.vmem [shape: f32[256,512], index: 3, kind: input, shape index: {}]
  %s4 = inlined_call_operand.vmem [shape: f32[256,1], index: 4, kind: input, shape index: {}]
  %s5 = inlined_call_operand.vmem [shape: f32[1,256], index: 5, kind: input, shape index: {}]
  %s6 = inlined_call_operand.<no memory space> [shape: f32[1,1], index: 6, kind: input, shape index: {}]
  %s7 = inlined_call_operand.hbm [shape: f32[1,128], index: 7, kind: output, shape index: {}]
  %s8 = sld [smem:[#allocation0]]
  $region38: #{tpu_custom_call.1} parent=0
    _
  %s10 = ssub.s32 1, %s8
  %s11 = scalar_select 0, %s10, %s8
  %v12 = vstv %s6
  %13 = vst [vmem:[#allocation2] sm:$0x1] %v12
  $region1: #{tpu_custom_call.1} parent=0
    #allocation3 [shape = 'u8[512]{0}', space=vmem, size = 0x400, scoped, tag = 'output window, operand 0, single buffered']
    #allocation4 [shape = 's32[1]{0}', space=sflag, size = 0x4, scoped, tag = 'scoped memory for tpu_custom_call.1']
    %14 = vsyncpa [#allocation4], 0
    // Predicated region
    $region2: #{tpu_custom_call.1} parent=1 // pred_check
      _
    $region3: #{tpu_custom_call.1} parent=1 // pred_check_branch
      %16 = sbr.rel (0) target = $region5
    $region4: #{tpu_custom_call.1} parent=1 // pred_region
      _
    $region5: #{tpu_custom_call.1} parent=1 // pred_fallthru
      _
    // Predicated region
    $region6: #{tpu_custom_call.1} parent=1 // pred_check
      _
    $region7: #{tpu_custom_call.1} parent=1 // pred_check_branch
      %18 = sbr.rel (0) target = $region9
    $region8: #{tpu_custom_call.1} parent=1 // pred_region
      _
    $region9: #{tpu_custom_call.1} parent=1 // pred_fallthru
      _
    // Predicated region
    $region10: #{tpu_custom_call.1} parent=1 // pred_check
      _
    $region11: #{tpu_custom_call.1} parent=1 // pred_check_branch
      %20 = sbr.rel (0) target = $region13
    $region12: #{tpu_custom_call.1} parent=1 // pred_region
      _
    $region13: #{tpu_custom_call.1} parent=1 // pred_fallthru
      _
    // Predicated region
    $region14: #{tpu_custom_call.1} parent=1 // pred_check
      _
    $region15: #{tpu_custom_call.1} parent=1 // pred_check_branch
      %22 = sbr.rel (0) target = $region17
    $region16: #{tpu_custom_call.1} parent=1 // pred_region
      _
    $region17: #{tpu_custom_call.1} parent=1 // pred_fallthru
      _
    // Predicated region
    $region18: #{tpu_custom_call.1} parent=1 // pred_check
      _
    $region19: #{tpu_custom_call.1} parent=1 // pred_check_branch
      %24 = sbr.rel (0) target = $region21
    $region20: #{tpu_custom_call.1} parent=1 // pred_region
      _
    $region21: #{tpu_custom_call.1} parent=1 // pred_fallthru
      _
    // Predicated region
    $region22: #{tpu_custom_call.1} parent=1 // pred_check
      _
    $region23: #{tpu_custom_call.1} parent=1 // pred_check_branch
      %26 = sbr.rel (0) target = $region25
    $region24: #{tpu_custom_call.1} parent=1 // pred_region
      _
    $region25: #{tpu_custom_call.1} parent=1 // pred_fallthru
      _
    // Predicated region
    $region26: #{tpu_custom_call.1} parent=1 // pred_check
      _
    $region27: #{tpu_custom_call.1} parent=1 // pred_check_branch
      %28 = sbr.rel (0) target = $region29
    $region28: #{tpu_custom_call.1} parent=1 // pred_region
      _
    $region29: #{tpu_custom_call.1} parent=1 // pred_fallthru
      _
    %v29 = vld [vmem:[%s1] sm:$0xff]
    %v30 = vld [vmem:[%s1 + $0x8] sm:$0xff]
    %v31 = vld [vmem:[%s1 + $0x10] sm:$0xff]
    %v32 = vld [vmem:[%s1 + $0x18] sm:$0xff]
    %v33 = vld [vmem:[%s1 + $0x20] sm:$0xff]
    %v34 = vld [vmem:[%s1 + $0x28] sm:$0xff]
    %v35 = vld [vmem:[%s1 + $0x30] sm:$0xff]
    %v36 = vld [vmem:[%s1 + $0x38] sm:$0xff]
    %v37 = vld [vmem:[%s1 + $0x40] sm:$0xff]
    %v38 = vld [vmem:[%s1 + $0x48] sm:$0xff]
    %v39 = vld [vmem:[%s1 + $0x50] sm:$0xff]
    %v40 = vld [vmem:[%s1 + $0x58] sm:$0xff]
    %v41 = vld [vmem:[%s1 + $0x60] sm:$0xff]
    %v42 = vld [vmem:[%s1 + $0x68] sm:$0xff]
    %v43 = vld [vmem:[%s1 + $0x70] sm:$0xff]
    %v44 = vld [vmem:[%s1 + $0x78] sm:$0xff]
    %v45 = vld [vmem:[%s1 + $0x80] sm:$0xff]
    %v46 = vld [vmem:[%s1 + $0x88] sm:$0xff]
    %v47 = vld [vmem:[%s1 + $0x90] sm:$0xff]
    %v48 = vld [vmem:[%s1 + $0x98] sm:$0xff]
    %v49 = vld [vmem:[%s1 + $0xa0] sm:$0xff]
    %v50 = vld [vmem:[%s1 + $0xa8] sm:$0xff]
    %v51 = vld [vmem:[%s1 + $0xb0] sm:$0xff]
    %v52 = vld [vmem:[%s1 + $0xb8] sm:$0xff]
    %v53 = vld [vmem:[%s1 + $0xc0] sm:$0xff]
    %v54 = vld [vmem:[%s1 + $0xc8] sm:$0xff]
    %v55 = vld [vmem:[%s1 + $0xd0] sm:$0xff]
    %v56 = vld [vmem:[%s1 + $0xd8] sm:$0xff]
    %v57 = vld [vmem:[%s1 + $0xe0] sm:$0xff]
    %v58 = vld [vmem:[%s1 + $0xe8] sm:$0xff]
    %v59 = vld [vmem:[%s1 + $0xf0] sm:$0xff]
    %v60 = vld [vmem:[%s1 + $0xf8] sm:$0xff]
    %v61 = vld [vmem:[%s1 + $0x100] sm:$0xff]
    %v62 = vld [vmem:[%s1 + $0x108] sm:$0xff]
    %v63 = vld [vmem:[%s1 + $0x110] sm:$0xff]
    %v64 = vld [vmem:[%s1 + $0x118] sm:$0xff]
    %v65 = vld [vmem:[%s1 + $0x120] sm:$0xff]
    %v66 = vld [vmem:[%s1 + $0x128] sm:$0xff]
    %v67 = vld [vmem:[%s1 + $0x130] sm:$0xff]
    %v68 = vld [vmem:[%s1 + $0x138] sm:$0xff]
    %v69 = vld [vmem:[%s1 + $0x140] sm:$0xff]
    %v70 = vld [vmem:[%s1 + $0x148] sm:$0xff]
    %v71 = vld [vmem:[%s1 + $0x150] sm:$0xff]
    %v72 = vld [vmem:[%s1 + $0x158] sm:$0xff]
    %v73 = vld [vmem:[%s1 + $0x160] sm:$0xff]
    %v74 = vld [vmem:[%s1 + $0x168] sm:$0xff]
    %v75 = vld [vmem:[%s1 + $0x170] sm:$0xff]
    %v76 = vld [vmem:[%s1 + $0x178] sm:$0xff]
    %v77 = vld [vmem:[%s1 + $0x180] sm:$0xff]
    %v78 = vld [vmem:[%s1 + $0x188] sm:$0xff]
    %v79 = vld [vmem:[%s1 + $0x190] sm:$0xff]
    %v80 = vld [vmem:[%s1 + $0x198] sm:$0xff]
    %v81 = vld [vmem:[%s1 + $0x1a0] sm:$0xff]
    %v82 = vld [vmem:[%s1 + $0x1a8] sm:$0xff]
    %v83 = vld [vmem:[%s1 + $0x1b0] sm:$0xff]
    %v84 = vld [vmem:[%s1 + $0x1b8] sm:$0xff]
    %v85 = vld [vmem:[%s1 + $0x1c0] sm:$0xff]
    %v86 = vld [vmem:[%s1 + $0x1c8] sm:$0xff]
    %v87 = vld [vmem:[%s1 + $0x1d0] sm:$0xff]
    %v88 = vld [vmem:[%s1 + $0x1d8] sm:$0xff]
    %v89 = vld [vmem:[%s1 + $0x1e0] sm:$0xff]
    %v90 = vld [vmem:[%s1 + $0x1e8] sm:$0xff]
    %v91 = vld [vmem:[%s1 + $0x1f0] sm:$0xff]
    %v92 = vld [vmem:[%s1 + $0x1f8] sm:$0xff]
    %v93 = vld [vmem:[%s0] sm:$0xff]
    %v94 = vld [vmem:[%s0 + $0x8] sm:$0xff]
    %v95 = vld [vmem:[%s0 + $0x10] sm:$0xff]
    %v96 = vld [vmem:[%s0 + $0x18] sm:$0xff]
    %v97 = vld [vmem:[%s0 + $0x20] sm:$0xff]
    %v98 = vld [vmem:[%s0 + $0x28] sm:$0xff]
    %v99 = vld [vmem:[%s0 + $0x30] sm:$0xff]
    %v100 = vld [vmem:[%s0 + $0x38] sm:$0xff]
    %v101 = vld [vmem:[%s0 + $0x40] sm:$0xff]
    %v102 = vld [vmem:[%s0 + $0x48] sm:$0xff]
    %v103 = vld [vmem:[%s0 + $0x50] sm:$0xff]
    %v104 = vld [vmem:[%s0 + $0x58] sm:$0xff]
    %v105 = vld [vmem:[%s0 + $0x60] sm:$0xff]
    %v106 = vld [vmem:[%s0 + $0x68] sm:$0xff]
    %v107 = vld [vmem:[%s0 + $0x70] sm:$0xff]
    %v108 = vld [vmem:[%s0 + $0x78] sm:$0xff]
    %v109 = vld [vmem:[%s2] sm:$0xff]
    %v110 = vld [vmem:[%s2 + $0x8] sm:$0xff]
    %v111 = vld [vmem:[%s2 + $0x10] sm:$0xff]
    %v112 = vld [vmem:[%s2 + $0x18] sm:$0xff]
    %v113 = vld [vmem:[%s2 + $0x20] sm:$0xff]
    %v114 = vld [vmem:[%s2 + $0x28] sm:$0xff]
    %v115 = vld [vmem:[%s2 + $0x30] sm:$0xff]
    %v116 = vld [vmem:[%s2 + $0x38] sm:$0xff]
    %v117 = vld [vmem:[%s2 + $0x40] sm:$0xff]
    %v118 = vld [vmem:[%s2 + $0x48] sm:$0xff]
    %v119 = vld [vmem:[%s2 + $0x50] sm:$0xff]
    %v120 = vld [vmem:[%s2 + $0x58] sm:$0xff]
    %v121 = vld [vmem:[%s2 + $0x60] sm:$0xff]
    %v122 = vld [vmem:[%s2 + $0x68] sm:$0xff]
    %v123 = vld [vmem:[%s2 + $0x70] sm:$0xff]
    %v124 = vld [vmem:[%s2 + $0x78] sm:$0xff]
    %v125 = vld [vmem:[%s2 + $0x80] sm:$0xff]
    %v126 = vld [vmem:[%s2 + $0x88] sm:$0xff]
    %v127 = vld [vmem:[%s2 + $0x90] sm:$0xff]
    %v128 = vld [vmem:[%s2 + $0x98] sm:$0xff]
    %v129 = vld [vmem:[%s2 + $0xa0] sm:$0xff]
    %v130 = vld [vmem:[%s2 + $0xa8] sm:$0xff]
    %v131 = vld [vmem:[%s2 + $0xb0] sm:$0xff]
    %v132 = vld [vmem:[%s2 + $0xb8] sm:$0xff]
    %v133 = vld [vmem:[%s2 + $0xc0] sm:$0xff]
    %v134 = vld [vmem:[%s2 + $0xc8] sm:$0xff]
    %v135 = vld [vmem:[%s2 + $0xd0] sm:$0xff]
    %v136 = vld [vmem:[%s2 + $0xd8] sm:$0xff]
    %v137 = vld [vmem:[%s2 + $0xe0] sm:$0xff]
    %v138 = vld [vmem:[%s2 + $0xe8] sm:$0xff]
    %v139 = vld [vmem:[%s2 + $0xf0] sm:$0xff]
    %v140 = vld [vmem:[%s2 + $0xf8] sm:$0xff]
    %v141 = vld [vmem:[%s2 + $0x100] sm:$0xff]
    %v142 = vld [vmem:[%s2 + $0x108] sm:$0xff]
    %v143 = vld [vmem:[%s2 + $0x110] sm:$0xff]
    %v144 = vld [vmem:[%s2 + $0x118] sm:$0xff]
    %v145 = vld [vmem:[%s2 + $0x120] sm:$0xff]
    %v146 = vld [vmem:[%s2 + $0x128] sm:$0xff]
    %v147 = vld [vmem:[%s2 + $0x130] sm:$0xff]
    %v148 = vld [vmem:[%s2 + $0x138] sm:$0xff]
    %v149 = vld [vmem:[%s2 + $0x140] sm:$0xff]
    %v150 = vld [vmem:[%s2 + $0x148] sm:$0xff]
    %v151 = vld [vmem:[%s2 + $0x150] sm:$0xff]
    %v152 = vld [vmem:[%s2 + $0x158] sm:$0xff]
    %v153 = vld [vmem:[%s2 + $0x160] sm:$0xff]
    %v154 = vld [vmem:[%s2 + $0x168] sm:$0xff]
    %v155 = vld [vmem:[%s2 + $0x170] sm:$0xff]
    %v156 = vld [vmem:[%s2 + $0x178] sm:$0xff]
    %v157 = vld [vmem:[%s2 + $0x180] sm:$0xff]
    %v158 = vld [vmem:[%s2 + $0x188] sm:$0xff]
    %v159 = vld [vmem:[%s2 + $0x190] sm:$0xff]
    %v160 = vld [vmem:[%s2 + $0x198] sm:$0xff]
    %v161 = vld [vmem:[%s2 + $0x1a0] sm:$0xff]
    %v162 = vld [vmem:[%s2 + $0x1a8] sm:$0xff]
    %v163 = vld [vmem:[%s2 + $0x1b0] sm:$0xff]
    %v164 = vld [vmem:[%s2 + $0x1b8] sm:$0xff]
    %v165 = vld [vmem:[%s2 + $0x1c0] sm:$0xff]
    %v166 = vld [vmem:[%s2 + $0x1c8] sm:$0xff]
    %v167 = vld [vmem:[%s2 + $0x1d0] sm:$0xff]
    %v168 = vld [vmem:[%s2 + $0x1d8] sm:$0xff]
    %v169 = vld [vmem:[%s2 + $0x1e0] sm:$0xff]
    %v170 = vld [vmem:[%s2 + $0x1e8] sm:$0xff]
    %v171 = vld [vmem:[%s2 + $0x1f0] sm:$0xff]
    %v172 = vld [vmem:[%s2 + $0x1f8] sm:$0xff]
    %174 = vset.pattern.permute.xlu0 0
    %175 = vperm.xlu0 %174, %v109
    %v176 = vpop.permute.xlu0 %175
    %179 = vset.pattern.permute.xlu0 0
    %180 = vperm.xlu0 %179, %v110
    %v181 = vpop.permute.xlu0 %180
    %184 = vset.pattern.permute.xlu0 0
    %185 = vperm.xlu0 %184, %v111
    %v186 = vpop.permute.xlu0 %185
    %189 = vset.pattern.permute.xlu0 0
    %190 = vperm.xlu0 %189, %v112
    %v191 = vpop.permute.xlu0 %190
    %194 = vset.pattern.permute.xlu0 0
    %195 = vperm.xlu0 %194, %v113
    %v196 = vpop.permute.xlu0 %195
    %199 = vset.pattern.permute.xlu0 0
    %200 = vperm.xlu0 %199, %v114
    %v201 = vpop.permute.xlu0 %200
    %204 = vset.pattern.permute.xlu0 0
    %205 = vperm.xlu0 %204, %v115
    %v206 = vpop.permute.xlu0 %205
    %209 = vset.pattern.permute.xlu0 0
    %210 = vperm.xlu0 %209, %v116
    %v211 = vpop.permute.xlu0 %210
    %214 = vset.pattern.permute.xlu0 0
    %215 = vperm.xlu0 %214, %v117
    %v216 = vpop.permute.xlu0 %215
    %219 = vset.pattern.permute.xlu0 0
    %220 = vperm.xlu0 %219, %v118
    %v221 = vpop.permute.xlu0 %220
    %224 = vset.pattern.permute.xlu0 0
    %225 = vperm.xlu0 %224, %v119
    %v226 = vpop.permute.xlu0 %225
    %229 = vset.pattern.permute.xlu0 0
    %230 = vperm.xlu0 %229, %v120
    %v231 = vpop.permute.xlu0 %230
    %234 = vset.pattern.permute.xlu0 0
    %235 = vperm.xlu0 %234, %v121
    %v236 = vpop.permute.xlu0 %235
    %239 = vset.pattern.permute.xlu0 0
    %240 = vperm.xlu0 %239, %v122
    %v241 = vpop.permute.xlu0 %240
    %244 = vset.pattern.permute.xlu0 0
    %245 = vperm.xlu0 %244, %v123
    %v246 = vpop.permute.xlu0 %245
    %249 = vset.pattern.permute.xlu0 0
    %250 = vperm.xlu0 %249, %v124
    %v251 = vpop.permute.xlu0 %250
    %254 = vset.pattern.permute.xlu0 0
    %255 = vperm.xlu0 %254, %v125
    %v256 = vpop.permute.xlu0 %255
    %259 = vset.pattern.permute.xlu0 0
    %260 = vperm.xlu0 %259, %v126
    %v261 = vpop.permute.xlu0 %260
    %264 = vset.pattern.permute.xlu0 0
    %265 = vperm.xlu0 %264, %v127
    %v266 = vpop.permute.xlu0 %265
    %269 = vset.pattern.permute.xlu0 0
    %270 = vperm.xlu0 %269, %v128
    %v271 = vpop.permute.xlu0 %270
    %274 = vset.pattern.permute.xlu0 0
    %275 = vperm.xlu0 %274, %v129
    %v276 = vpop.permute.xlu0 %275
    %279 = vset.pattern.permute.xlu0 0
    %280 = vperm.xlu0 %279, %v130
    %v281 = vpop.permute.xlu0 %280
    %284 = vset.pattern.permute.xlu0 0
    %285 = vperm.xlu0 %284, %v131
    %v286 = vpop.permute.xlu0 %285
    %289 = vset.pattern.permute.xlu0 0
    %290 = vperm.xlu0 %289, %v132
    %v291 = vpop.permute.xlu0 %290
    %294 = vset.pattern.permute.xlu0 0
    %295 = vperm.xlu0 %294, %v133
    %v296 = vpop.permute.xlu0 %295
    %299 = vset.pattern.permute.xlu0 0
    %300 = vperm.xlu0 %299, %v134
    %v301 = vpop.permute.xlu0 %300
    %304 = vset.pattern.permute.xlu0 0
    %305 = vperm.xlu0 %304, %v135
    %v306 = vpop.permute.xlu0 %305
    %309 = vset.pattern.permute.xlu0 0
    %310 = vperm.xlu0 %309, %v136
    %v311 = vpop.permute.xlu0 %310
    %314 = vset.pattern.permute.xlu0 0
    %315 = vperm.xlu0 %314, %v137
    %v316 = vpop.permute.xlu0 %315
    %319 = vset.pattern.permute.xlu0 0
    %320 = vperm.xlu0 %319, %v138
    %v321 = vpop.permute.xlu0 %320
    %324 = vset.pattern.permute.xlu0 0
    %325 = vperm.xlu0 %324, %v139
    %v326 = vpop.permute.xlu0 %325
    %329 = vset.pattern.permute.xlu0 0
    %330 = vperm.xlu0 %329, %v140
    %v331 = vpop.permute.xlu0 %330
    %334 = vset.pattern.permute.xlu0 0
    %335 = vperm.xlu0 %334, %v141
    %v336 = vpop.permute.xlu0 %335
    %339 = vset.pattern.permute.xlu0 0
    %340 = vperm.xlu0 %339, %v142
    %v341 = vpop.permute.xlu0 %340
    %344 = vset.pattern.permute.xlu0 0
    %345 = vperm.xlu0 %344, %v143
    %v346 = vpop.permute.xlu0 %345
    %349 = vset.pattern.permute.xlu0 0
    %350 = vperm.xlu0 %349, %v144
    %v351 = vpop.permute.xlu0 %350
    %354 = vset.pattern.permute.xlu0 0
    %355 = vperm.xlu0 %354, %v145
    %v356 = vpop.permute.xlu0 %355
    %359 = vset.pattern.permute.xlu0 0
    %360 = vperm.xlu0 %359, %v146
    %v361 = vpop.permute.xlu0 %360
    %364 = vset.pattern.permute.xlu0 0
    %365 = vperm.xlu0 %364, %v147
    %v366 = vpop.permute.xlu0 %365
    %369 = vset.pattern.permute.xlu0 0
    %370 = vperm.xlu0 %369, %v148
    %v371 = vpop.permute.xlu0 %370
    %374 = vset.pattern.permute.xlu0 0
    %375 = vperm.xlu0 %374, %v149
    %v376 = vpop.permute.xlu0 %375
    %379 = vset.pattern.permute.xlu0 0
    %380 = vperm.xlu0 %379, %v150
    %v381 = vpop.permute.xlu0 %380
    %384 = vset.pattern.permute.xlu0 0
    %385 = vperm.xlu0 %384, %v151
    %v386 = vpop.permute.xlu0 %385
    %389 = vset.pattern.permute.xlu0 0
    %390 = vperm.xlu0 %389, %v152
    %v391 = vpop.permute.xlu0 %390
    %394 = vset.pattern.permute.xlu0 0
    %395 = vperm.xlu0 %394, %v153
    %v396 = vpop.permute.xlu0 %395
    %399 = vset.pattern.permute.xlu0 0
    %400 = vperm.xlu0 %399, %v154
    %v401 = vpop.permute.xlu0 %400
    %404 = vset.pattern.permute.xlu0 0
    %405 = vperm.xlu0 %404, %v155
    %v406 = vpop.permute.xlu0 %405
    %409 = vset.pattern.permute.xlu0 0
    %410 = vperm.xlu0 %409, %v156
    %v411 = vpop.permute.xlu0 %410
    %414 = vset.pattern.permute.xlu0 0
    %415 = vperm.xlu0 %414, %v157
    %v416 = vpop.permute.xlu0 %415
    %419 = vset.pattern.permute.xlu0 0
    %420 = vperm.xlu0 %419, %v158
    %v421 = vpop.permute.xlu0 %420
    %424 = vset.pattern.permute.xlu0 0
    %425 = vperm.xlu0 %424, %v159
    %v426 = vpop.permute.xlu0 %425
    %429 = vset.pattern.permute.xlu0 0
    %430 = vperm.xlu0 %429, %v160
    %v431 = vpop.permute.xlu0 %430
    %434 = vset.pattern.permute.xlu0 0
    %435 = vperm.xlu0 %434, %v161
    %v436 = vpop.permute.xlu0 %435
    %439 = vset.pattern.permute.xlu0 0
    %440 = vperm.xlu0 %439, %v162
    %v441 = vpop.permute.xlu0 %440
    %444 = vset.pattern.permute.xlu0 0
    %445 = vperm.xlu0 %444, %v163
    %v446 = vpop.permute.xlu0 %445
    %449 = vset.pattern.permute.xlu0 0
    %450 = vperm.xlu0 %449, %v164
    %v451 = vpop.permute.xlu0 %450
    %454 = vset.pattern.permute.xlu0 0
    %455 = vperm.xlu0 %454, %v165
    %v456 = vpop.permute.xlu0 %455
    %459 = vset.pattern.permute.xlu0 0
    %460 = vperm.xlu0 %459, %v166
    %v461 = vpop.permute.xlu0 %460
    %464 = vset.pattern.permute.xlu0 0
    %465 = vperm.xlu0 %464, %v167
    %v466 = vpop.permute.xlu0 %465
    %469 = vset.pattern.permute.xlu0 0
    %470 = vperm.xlu0 %469, %v168
    %v471 = vpop.permute.xlu0 %470
    %474 = vset.pattern.permute.xlu0 0
    %475 = vperm.xlu0 %474, %v169
    %v476 = vpop.permute.xlu0 %475
    %479 = vset.pattern.permute.xlu0 0
    %480 = vperm.xlu0 %479, %v170
    %v481 = vpop.permute.xlu0 %480
    %484 = vset.pattern.permute.xlu0 0
    %485 = vperm.xlu0 %484, %v171
    %v486 = vpop.permute.xlu0 %485
    %489 = vset.pattern.permute.xlu0 0
    %490 = vperm.xlu0 %489, %v172
    %v491 = vpop.permute.xlu0 %490
    %vm493 = vcmask 261120
    %v495 = vsel %vm493, %v29, 0
    %v498 = vsel %vm493, %v30, 0
    %v501 = vsel %vm493, %v31, 0
    %v504 = vsel %vm493, %v32, 0
    %v507 = vsel %vm493, %v33, 0
    %v510 = vsel %vm493, %v34, 0
    %v513 = vsel %vm493, %v35, 0
    %v516 = vsel %vm493, %v36, 0
    %v519 = vsel %vm493, %v37, 0
    %v522 = vsel %vm493, %v38, 0
    %v525 = vsel %vm493, %v39, 0
    %v528 = vsel %vm493, %v40, 0
    %v531 = vsel %vm493, %v41, 0
    %v534 = vsel %vm493, %v42, 0
    %v537 = vsel %vm493, %v43, 0
    %v540 = vsel %vm493, %v44, 0
    %v543 = vsel %vm493, %v45, 0
    %v546 = vsel %vm493, %v46, 0
    %v549 = vsel %vm493, %v47, 0
    %v552 = vsel %vm493, %v48, 0
    %v555 = vsel %vm493, %v49, 0
    %v558 = vsel %vm493, %v50, 0
    %v561 = vsel %vm493, %v51, 0
    %v564 = vsel %vm493, %v52, 0
    %v567 = vsel %vm493, %v53, 0
    %v570 = vsel %vm493, %v54, 0
    %v573 = vsel %vm493, %v55, 0
    %v576 = vsel %vm493, %v56, 0
    %v579 = vsel %vm493, %v57, 0
    %v582 = vsel %vm493, %v58, 0
    %v585 = vsel %vm493, %v59, 0
    %v588 = vsel %vm493, %v60, 0
    %v591 = vsel %vm493, %v61, 0
    %v594 = vsel %vm493, %v62, 0
    %v597 = vsel %vm493, %v63, 0
    %v600 = vsel %vm493, %v64, 0
    %v603 = vsel %vm493, %v65, 0
    %v606 = vsel %vm493, %v66, 0
    %v609 = vsel %vm493, %v67, 0
    %v612 = vsel %vm493, %v68, 0
    %v615 = vsel %vm493, %v69, 0
    %v618 = vsel %vm493, %v70, 0
    %v621 = vsel %vm493, %v71, 0
    %v624 = vsel %vm493, %v72, 0
    %v627 = vsel %vm493, %v73, 0
    %v630 = vsel %vm493, %v74, 0
    %v633 = vsel %vm493, %v75, 0
    %v636 = vsel %vm493, %v76, 0
    %v639 = vsel %vm493, %v77, 0
    %v642 = vsel %vm493, %v78, 0
    %v645 = vsel %vm493, %v79, 0
    %v648 = vsel %vm493, %v80, 0
    %v651 = vsel %vm493, %v81, 0
    %v654 = vsel %vm493, %v82, 0
    %v657 = vsel %vm493, %v83, 0
    %v660 = vsel %vm493, %v84, 0
    %v663 = vsel %vm493, %v85, 0
    %v666 = vsel %vm493, %v86, 0
    %v669 = vsel %vm493, %v87, 0
    %v672 = vsel %vm493, %v88, 0
    %v675 = vsel %vm493, %v89, 0
    %v678 = vsel %vm493, %v90, 0
    %v681 = vsel %vm493, %v91, 0
    %v684 = vsel %vm493, %v92, 0
    %v687 = vsel %vm493, %v93, 0
    %v690 = vsel %vm493, %v94, 0
    %v693 = vsel %vm493, %v95, 0
    %v696 = vsel %vm493, %v96, 0
    %v699 = vsel %vm493, %v97, 0
    %v702 = vsel %vm493, %v98, 0
    %v705 = vsel %vm493, %v99, 0
    %v708 = vsel %vm493, %v100, 0
    %v711 = vsel %vm493, %v101, 0
    %v714 = vsel %vm493, %v102, 0
    %v717 = vsel %vm493, %v103, 0
    %v720 = vsel %vm493, %v104, 0
    %v723 = vsel %vm493, %v105, 0
    %v726 = vsel %vm493, %v106, 0
    %v729 = vsel %vm493, %v107, 0
    %v732 = vsel %vm493, %v108, 0
    %734 = vmatprep.subr.mxu0 0.0
    %735 = vmatpush1.xpose.msra.mxu0 %v732
    %736 = vmatprep.subr.mxu0 0.0
    %737 = vmatpush1.xpose.msra.mxu0 %v729
    %738 = vmatprep.subr.mxu0 0.0
    %739 = vmatpush1.xpose.msra.mxu0 %v726
    %740 = vmatprep.subr.mxu0 0.0
    %741 = vmatpush1.xpose.msra.mxu0 %v723
    %742 = vmatprep.subr.mxu0 0.0
    %743 = vmatpush1.xpose.msra.mxu0 %v720
    %744 = vmatprep.subr.mxu0 0.0
    %745 = vmatpush1.xpose.msra.mxu0 %v717
    %746 = vmatprep.subr.mxu0 0.0
    %747 = vmatpush1.xpose.msra.mxu0 %v714
    %748 = vmatprep.subr.mxu0 0.0
    %749 = vmatpush1.xpose.msra.mxu0 %v711
    %750 = vmatprep.subr.mxu0 0.0
    %751 = vmatpush1.xpose.msra.mxu0 %v708
    %752 = vmatprep.subr.mxu0 0.0
    %753 = vmatpush1.xpose.msra.mxu0 %v705
    %754 = vmatprep.subr.mxu0 0.0
    %755 = vmatpush1.xpose.msra.mxu0 %v702
    %756 = vmatprep.subr.mxu0 0.0
    %757 = vmatpush1.xpose.msra.mxu0 %v699
    %758 = vmatprep.subr.mxu0 0.0
    %759 = vmatpush1.xpose.msra.mxu0 %v696
    %760 = vmatprep.subr.mxu0 0.0
    %761 = vmatpush1.xpose.msra.mxu0 %v693
    %762 = vmatprep.subr.mxu0 0.0
    %763 = vmatpush1.xpose.msra.mxu0 %v690
    %764 = vmatprep.subr.mxu0 0.0
    %765 = vmatpush1.xpose.msra.mxu0 %v687
    %766 = vmatprep.subr.mxu0 0.0
    %767 = vmatpush2.xpose.msra.mxu0 0.0
    %768 = vmatprep.subr.mxu0 0.0
    %769 = vmatpush2.xpose.msra.mxu0 0.0
    %770 = vmatprep.subr.mxu0 0.0
    %771 = vmatpush2.xpose.msra.mxu0 0.0
    %772 = vmatprep.subr.mxu0 0.0
    %773 = vmatpush2.xpose.msra.mxu0 0.0
    %774 = vmatprep.subr.mxu0 0.0
    %775 = vmatpush2.xpose.msra.mxu0 0.0
    %776 = vmatprep.subr.mxu0 0.0
    %777 = vmatpush2.xpose.msra.mxu0 0.0
    %778 = vmatprep.subr.mxu0 0.0
    %779 = vmatpush2.xpose.msra.mxu0 0.0
    %780 = vmatprep.subr.mxu0 0.0
    %781 = vmatpush2.xpose.msra.mxu0 0.0
    %782 = vmatprep.subr.mxu0 0.0
    %783 = vmatpush2.xpose.msra.mxu0 0.0
    %784 = vmatprep.subr.mxu0 0.0
    %785 = vmatpush2.xpose.msra.mxu0 0.0
    %786 = vmatprep.subr.mxu0 0.0
    %787 = vmatpush2.xpose.msra.mxu0 0.0
    %788 = vmatprep.subr.mxu0 0.0
    %789 = vmatpush2.xpose.msra.mxu0 0.0
    %790 = vmatprep.subr.mxu0 0.0
    %791 = vmatpush2.xpose.msra.mxu0 0.0
    %792 = vmatprep.subr.mxu0 0.0
    %793 = vmatpush2.xpose.msra.mxu0 0.0
    %794 = vmatprep.subr.mxu0 0.0
    %795 = vmatpush2.xpose.msra.mxu0 0.0
    %796 = vmatprep.subr.mxu0 0.0
    %797 = vmatpush2.xpose.msra.mxu0 0.0
    %798 = vmatprep.mubr.f32.mxu0 0.0
    %799 = vmatmul.mubr.f32.gmra.mxu0 %v495
    %v800 = vpop.f32.mrf.mxu0
    %v801 = vadd.f32 %v176, %v800
    %v802 = vpop.f32.mrf.mxu0
    %803 = vmatprep.mubr.f32.mxu0 0.0
    %804 = vmatmul.mubr.f32.gmra.mxu0 %v498
    %v805 = vpop.f32.mrf.mxu0
    %v806 = vadd.f32 %v181, %v805
    %v807 = vpop.f32.mrf.mxu0
    %808 = vmatprep.mubr.f32.mxu0 0.0
    %809 = vmatmul.mubr.f32.gmra.mxu0 %v501
    %v810 = vpop.f32.mrf.mxu0
    %v811 = vadd.f32 %v186, %v810
    %v812 = vpop.f32.mrf.mxu0
    %813 = vmatprep.mubr.f32.mxu0 0.0
    %814 = vmatmul.mubr.f32.gmra.mxu0 %v504
    %v815 = vpop.f32.mrf.mxu0
    %v816 = vadd.f32 %v191, %v815
    %v817 = vpop.f32.mrf.mxu0
    %818 = vmatprep.mubr.f32.mxu0 0.0
    %819 = vmatmul.mubr.f32.gmra.mxu0 %v507
    %v820 = vpop.f32.mrf.mxu0
    %v821 = vadd.f32 %v196, %v820
    %v822 = vpop.f32.mrf.mxu0
    %823 = vmatprep.mubr.f32.mxu0 0.0
    %824 = vmatmul.mubr.f32.gmra.mxu0 %v510
    %v825 = vpop.f32.mrf.mxu0
    %v826 = vadd.f32 %v201, %v825
    %v827 = vpop.f32.mrf.mxu0
    %828 = vmatprep.mubr.f32.mxu0 0.0
    %829 = vmatmul.mubr.f32.gmra.mxu0 %v513
    %v830 = vpop.f32.mrf.mxu0
    %v831 = vadd.f32 %v206, %v830
    %v832 = vpop.f32.mrf.mxu0
    %833 = vmatprep.mubr.f32.mxu0 0.0
    %834 = vmatmul.mubr.f32.gmra.mxu0 %v516
    %v835 = vpop.f32.mrf.mxu0
    %v836 = vadd.f32 %v211, %v835
    %v837 = vpop.f32.mrf.mxu0
    %838 = vmatprep.mubr.f32.mxu0 0.0
    %839 = vmatmul.mubr.f32.gmra.mxu0 %v519
    %v840 = vpop.f32.mrf.mxu0
    %v841 = vadd.f32 %v216, %v840
    %v842 = vpop.f32.mrf.mxu0
    %843 = vmatprep.mubr.f32.mxu0 0.0
    %844 = vmatmul.mubr.f32.gmra.mxu0 %v522
    %v845 = vpop.f32.mrf.mxu0
    %v846 = vadd.f32 %v221, %v845
    %v847 = vpop.f32.mrf.mxu0
    %848 = vmatprep.mubr.f32.mxu0 0.0
    %849 = vmatmul.mubr.f32.gmra.mxu0 %v525
    %v850 = vpop.f32.mrf.mxu0
    %v851 = vadd.f32 %v226, %v850
    %v852 = vpop.f32.mrf.mxu0
    %853 = vmatprep.mubr.f32.mxu0 0.0
    %854 = vmatmul.mubr.f32.gmra.mxu0 %v528
    %v855 = vpop.f32.mrf.mxu0
    %v856 = vadd.f32 %v231, %v855
    %v857 = vpop.f32.mrf.mxu0
    %858 = vmatprep.mubr.f32.mxu0 0.0
    %859 = vmatmul.mubr.f32.gmra.mxu0 %v531
    %v860 = vpop.f32.mrf.mxu0
    %v861 = vadd.f32 %v236, %v860
    %v862 = vpop.f32.mrf.mxu0
    %863 = vmatprep.mubr.f32.mxu0 0.0
    %864 = vmatmul.mubr.f32.gmra.mxu0 %v534
    %v865 = vpop.f32.mrf.mxu0
    %v866 = vadd.f32 %v241, %v865
    %v867 = vpop.f32.mrf.mxu0
    %868 = vmatprep.mubr.f32.mxu0 0.0
    %869 = vmatmul.mubr.f32.gmra.mxu0 %v537
    %v870 = vpop.f32.mrf.mxu0
    %v871 = vadd.f32 %v246, %v870
    %v872 = vpop.f32.mrf.mxu0
    %873 = vmatprep.mubr.f32.mxu0 0.0
    %874 = vmatmul.mubr.f32.gmra.mxu0 %v540
    %v875 = vpop.f32.mrf.mxu0
    %v876 = vadd.f32 %v251, %v875
    %v877 = vpop.f32.mrf.mxu0
    %878 = vmatprep.mubr.f32.mxu0 0.0
    %879 = vmatmul.mubr.f32.gmra.mxu0 %v543
    %v880 = vpop.f32.mrf.mxu0
    %v881 = vadd.f32 %v256, %v880
    %v882 = vpop.f32.mrf.mxu0
    %883 = vmatprep.mubr.f32.mxu0 0.0
    %884 = vmatmul.mubr.f32.gmra.mxu0 %v546
    %v885 = vpop.f32.mrf.mxu0
    %v886 = vadd.f32 %v261, %v885
    %v887 = vpop.f32.mrf.mxu0
    %888 = vmatprep.mubr.f32.mxu0 0.0
    %889 = vmatmul.mubr.f32.gmra.mxu0 %v549
    %v890 = vpop.f32.mrf.mxu0
    %v891 = vadd.f32 %v266, %v890
    %v892 = vpop.f32.mrf.mxu0
    %893 = vmatprep.mubr.f32.mxu0 0.0
    %894 = vmatmul.mubr.f32.gmra.mxu0 %v552
    %v895 = vpop.f32.mrf.mxu0
    %v896 = vadd.f32 %v271, %v895
    %v897 = vpop.f32.mrf.mxu0
    %898 = vmatprep.mubr.f32.mxu0 0.0
    %899 = vmatmul.mubr.f32.gmra.mxu0 %v555
    %v900 = vpop.f32.mrf.mxu0
    %v901 = vadd.f32 %v276, %v900
    %v902 = vpop.f32.mrf.mxu0
    %903 = vmatprep.mubr.f32.mxu0 0.0
    %904 = vmatmul.mubr.f32.gmra.mxu0 %v558
    %v905 = vpop.f32.mrf.mxu0
    %v906 = vadd.f32 %v281, %v905
    %v907 = vpop.f32.mrf.mxu0
    %908 = vmatprep.mubr.f32.mxu0 0.0
    %909 = vmatmul.mubr.f32.gmra.mxu0 %v561
    %v910 = vpop.f32.mrf.mxu0
    %v911 = vadd.f32 %v286, %v910
    %v912 = vpop.f32.mrf.mxu0
    %913 = vmatprep.mubr.f32.mxu0 0.0
    %914 = vmatmul.mubr.f32.gmra.mxu0 %v564
    %v915 = vpop.f32.mrf.mxu0
    %v916 = vadd.f32 %v291, %v915
    %v917 = vpop.f32.mrf.mxu0
    %918 = vmatprep.mubr.f32.mxu0 0.0
    %919 = vmatmul.mubr.f32.gmra.mxu0 %v567
    %v920 = vpop.f32.mrf.mxu0
    %v921 = vadd.f32 %v296, %v920
    %v922 = vpop.f32.mrf.mxu0
    %923 = vmatprep.mubr.f32.mxu0 0.0
    %924 = vmatmul.mubr.f32.gmra.mxu0 %v570
    %v925 = vpop.f32.mrf.mxu0
    %v926 = vadd.f32 %v301, %v925
    %v927 = vpop.f32.mrf.mxu0
    %928 = vmatprep.mubr.f32.mxu0 0.0
    %929 = vmatmul.mubr.f32.gmra.mxu0 %v573
    %v930 = vpop.f32.mrf.mxu0
    %v931 = vadd.f32 %v306, %v930
    %v932 = vpop.f32.mrf.mxu0
    %933 = vmatprep.mubr.f32.mxu0 0.0
    %934 = vmatmul.mubr.f32.gmra.mxu0 %v576
    %v935 = vpop.f32.mrf.mxu0
    %v936 = vadd.f32 %v311, %v935
    %v937 = vpop.f32.mrf.mxu0
    %938 = vmatprep.mubr.f32.mxu0 0.0
    %939 = vmatmul.mubr.f32.gmra.mxu0 %v579
    %v940 = vpop.f32.mrf.mxu0
    %v941 = vadd.f32 %v316, %v940
    %v942 = vpop.f32.mrf.mxu0
    %943 = vmatprep.mubr.f32.mxu0 0.0
    %944 = vmatmul.mubr.f32.gmra.mxu0 %v582
    %v945 = vpop.f32.mrf.mxu0
    %v946 = vadd.f32 %v321, %v945
    %v947 = vpop.f32.mrf.mxu0
    %948 = vmatprep.mubr.f32.mxu0 0.0
    %949 = vmatmul.mubr.f32.gmra.mxu0 %v585
    %v950 = vpop.f32.mrf.mxu0
    %v951 = vadd.f32 %v326, %v950
    %v952 = vpop.f32.mrf.mxu0
    %953 = vmatprep.mubr.f32.mxu0 0.0
    %954 = vmatmul.mubr.f32.gmra.mxu0 %v588
    %v955 = vpop.f32.mrf.mxu0
    %v956 = vadd.f32 %v331, %v955
    %v957 = vpop.f32.mrf.mxu0
    %958 = vmatprep.mubr.f32.mxu0 0.0
    %959 = vmatmul.mubr.f32.gmra.mxu0 %v591
    %v960 = vpop.f32.mrf.mxu0
    %v961 = vadd.f32 %v336, %v960
    %v962 = vpop.f32.mrf.mxu0
    %963 = vmatprep.mubr.f32.mxu0 0.0
    %964 = vmatmul.mubr.f32.gmra.mxu0 %v594
    %v965 = vpop.f32.mrf.mxu0
    %v966 = vadd.f32 %v341, %v965
    %v967 = vpop.f32.mrf.mxu0
    %968 = vmatprep.mubr.f32.mxu0 0.0
    %969 = vmatmul.mubr.f32.gmra.mxu0 %v597
    %v970 = vpop.f32.mrf.mxu0
    %v971 = vadd.f32 %v346, %v970
    %v972 = vpop.f32.mrf.mxu0
    %973 = vmatprep.mubr.f32.mxu0 0.0
    %974 = vmatmul.mubr.f32.gmra.mxu0 %v600
    %v975 = vpop.f32.mrf.mxu0
    %v976 = vadd.f32 %v351, %v975
    %v977 = vpop.f32.mrf.mxu0
    %978 = vmatprep.mubr.f32.mxu0 0.0
    %979 = vmatmul.mubr.f32.gmra.mxu0 %v603
    %v980 = vpop.f32.mrf.mxu0
    %v981 = vadd.f32 %v356, %v980
    %v982 = vpop.f32.mrf.mxu0
    %983 = vmatprep.mubr.f32.mxu0 0.0
    %984 = vmatmul.mubr.f32.gmra.mxu0 %v606
    %v985 = vpop.f32.mrf.mxu0
    %v986 = vadd.f32 %v361, %v985
    %v987 = vpop.f32.mrf.mxu0
    %988 = vmatprep.mubr.f32.mxu0 0.0
    %989 = vmatmul.mubr.f32.gmra.mxu0 %v609
    %v990 = vpop.f32.mrf.mxu0
    %v991 = vadd.f32 %v366, %v990
    %v992 = vpop.f32.mrf.mxu0
    %993 = vmatprep.mubr.f32.mxu0 0.0
    %994 = vmatmul.mubr.f32.gmra.mxu0 %v612
    %v995 = vpop.f32.mrf.mxu0
    %v996 = vadd.f32 %v371, %v995
    %v997 = vpop.f32.mrf.mxu0
    %998 = vmatprep.mubr.f32.mxu0 0.0
    %999 = vmatmul.mubr.f32.gmra.mxu0 %v615
    %v1000 = vpop.f32.mrf.mxu0
    %v1001 = vadd.f32 %v376, %v1000
    %v1002 = vpop.f32.mrf.mxu0
    %1003 = vmatprep.mubr.f32.mxu0 0.0
    %1004 = vmatmul.mubr.f32.gmra.mxu0 %v618
    %v1005 = vpop.f32.mrf.mxu0
    %v1006 = vadd.f32 %v381, %v1005
    %v1007 = vpop.f32.mrf.mxu0
    %1008 = vmatprep.mubr.f32.mxu0 0.0
    %1009 = vmatmul.mubr.f32.gmra.mxu0 %v621
    %v1010 = vpop.f32.mrf.mxu0
    %v1011 = vadd.f32 %v386, %v1010
    %v1012 = vpop.f32.mrf.mxu0
    %1013 = vmatprep.mubr.f32.mxu0 0.0
    %1014 = vmatmul.mubr.f32.gmra.mxu0 %v624
    %v1015 = vpop.f32.mrf.mxu0
    %v1016 = vadd.f32 %v391, %v1015
    %v1017 = vpop.f32.mrf.mxu0
    %1018 = vmatprep.mubr.f32.mxu0 0.0
    %1019 = vmatmul.mubr.f32.gmra.mxu0 %v627
    %v1020 = vpop.f32.mrf.mxu0
    %v1021 = vadd.f32 %v396, %v1020
    %v1022 = vpop.f32.mrf.mxu0
    %1023 = vmatprep.mubr.f32.mxu0 0.0
    %1024 = vmatmul.mubr.f32.gmra.mxu0 %v630
    %v1025 = vpop.f32.mrf.mxu0
    %v1026 = vadd.f32 %v401, %v1025
    %v1027 = vpop.f32.mrf.mxu0
    %1028 = vmatprep.mubr.f32.mxu0 0.0
    %1029 = vmatmul.mubr.f32.gmra.mxu0 %v633
    %v1030 = vpop.f32.mrf.mxu0
    %v1031 = vadd.f32 %v406, %v1030
    %v1032 = vpop.f32.mrf.mxu0
    %1033 = vmatprep.mubr.f32.mxu0 0.0
    %1034 = vmatmul.mubr.f32.gmra.mxu0 %v636
    %v1035 = vpop.f32.mrf.mxu0
    %v1036 = vadd.f32 %v411, %v1035
    %v1037 = vpop.f32.mrf.mxu0
    %1038 = vmatprep.mubr.f32.mxu0 0.0
    %1039 = vmatmul.mubr.f32.gmra.mxu0 %v639
    %v1040 = vpop.f32.mrf.mxu0
    %v1041 = vadd.f32 %v416, %v1040
    %v1042 = vpop.f32.mrf.mxu0
    %1043 = vmatprep.mubr.f32.mxu0 0.0
    %1044 = vmatmul.mubr.f32.gmra.mxu0 %v642
    %v1045 = vpop.f32.mrf.mxu0
    %v1046 = vadd.f32 %v421, %v1045
    %v1047 = vpop.f32.mrf.mxu0
    %1048 = vmatprep.mubr.f32.mxu0 0.0
    %1049 = vmatmul.mubr.f32.gmra.mxu0 %v645
    %v1050 = vpop.f32.mrf.mxu0
    %v1051 = vadd.f32 %v426, %v1050
    %v1052 = vpop.f32.mrf.mxu0
    %1053 = vmatprep.mubr.f32.mxu0 0.0
    %1054 = vmatmul.mubr.f32.gmra.mxu0 %v648
    %v1055 = vpop.f32.mrf.mxu0
    %v1056 = vadd.f32 %v431, %v1055
    %v1057 = vpop.f32.mrf.mxu0
    %1058 = vmatprep.mubr.f32.mxu0 0.0
    %1059 = vmatmul.mubr.f32.gmra.mxu0 %v651
    %v1060 = vpop.f32.mrf.mxu0
    %v1061 = vadd.f32 %v436, %v1060
    %v1062 = vpop.f32.mrf.mxu0
    %1063 = vmatprep.mubr.f32.mxu0 0.0
    %1064 = vmatmul.mubr.f32.gmra.mxu0 %v654
    %v1065 = vpop.f32.mrf.mxu0
    %v1066 = vadd.f32 %v441, %v1065
    %v1067 = vpop.f32.mrf.mxu0
    %1068 = vmatprep.mubr.f32.mxu0 0.0
    %1069 = vmatmul.mubr.f32.gmra.mxu0 %v657
    %v1070 = vpop.f32.mrf.mxu0
    %v1071 = vadd.f32 %v446, %v1070
    %v1072 = vpop.f32.mrf.mxu0
    %1073 = vmatprep.mubr.f32.mxu0 0.0
    %1074 = vmatmul.mubr.f32.gmra.mxu0 %v660
    %v1075 = vpop.f32.mrf.mxu0
    %v1076 = vadd.f32 %v451, %v1075
    %v1077 = vpop.f32.mrf.mxu0
    %1078 = vmatprep.mubr.f32.mxu0 0.0
    %1079 = vmatmul.mubr.f32.gmra.mxu0 %v663
    %v1080 = vpop.f32.mrf.mxu0
    %v1081 = vadd.f32 %v456, %v1080
    %v1082 = vpop.f32.mrf.mxu0
    %1083 = vmatprep.mubr.f32.mxu0 0.0
    %1084 = vmatmul.mubr.f32.gmra.mxu0 %v666
    %v1085 = vpop.f32.mrf.mxu0
    %v1086 = vadd.f32 %v461, %v1085
    %v1087 = vpop.f32.mrf.mxu0
    %1088 = vmatprep.mubr.f32.mxu0 0.0
    %1089 = vmatmul.mubr.f32.gmra.mxu0 %v669
    %v1090 = vpop.f32.mrf.mxu0
    %v1091 = vadd.f32 %v466, %v1090
    %v1092 = vpop.f32.mrf.mxu0
    %1093 = vmatprep.mubr.f32.mxu0 0.0
    %1094 = vmatmul.mubr.f32.gmra.mxu0 %v672
    %v1095 = vpop.f32.mrf.mxu0
    %v1096 = vadd.f32 %v471, %v1095
    %v1097 = vpop.f32.mrf.mxu0
    %1098 = vmatprep.mubr.f32.mxu0 0.0
    %1099 = vmatmul.mubr.f32.gmra.mxu0 %v675
    %v1100 = vpop.f32.mrf.mxu0
    %v1101 = vadd.f32 %v476, %v1100
    %v1102 = vpop.f32.mrf.mxu0
    %1103 = vmatprep.mubr.f32.mxu0 0.0
    %1104 = vmatmul.mubr.f32.gmra.mxu0 %v678
    %v1105 = vpop.f32.mrf.mxu0
    %v1106 = vadd.f32 %v481, %v1105
    %v1107 = vpop.f32.mrf.mxu0
    %1108 = vmatprep.mubr.f32.mxu0 0.0
    %1109 = vmatmul.mubr.f32.gmra.mxu0 %v681
    %v1110 = vpop.f32.mrf.mxu0
    %v1111 = vadd.f32 %v486, %v1110
    %v1112 = vpop.f32.mrf.mxu0
    %1113 = vmatprep.mubr.f32.mxu0 0.0
    %1114 = vmatmul.mubr.f32.gmra.mxu0 %v684
    %v1115 = vpop.f32.mrf.mxu0
    %v1116 = vadd.f32 %v491, %v1115
    %v1117 = vpop.f32.mrf.mxu0
    %1118 = vdwg.mxu0
    %v1119 = vmax.f32 %v801, 0.0
    %v1120 = vmax.f32 %v806, 0.0
    %v1121 = vmax.f32 %v811, 0.0
    %v1122 = vmax.f32 %v816, 0.0
    %v1123 = vmax.f32 %v821, 0.0
    %v1124 = vmax.f32 %v826, 0.0
    %v1125 = vmax.f32 %v831, 0.0
    %v1126 = vmax.f32 %v836, 0.0
    %v1127 = vmax.f32 %v841, 0.0
    %v1128 = vmax.f32 %v846, 0.0
    %v1129 = vmax.f32 %v851, 0.0
    %v1130 = vmax.f32 %v856, 0.0
    %v1131 = vmax.f32 %v861, 0.0
    %v1132 = vmax.f32 %v866, 0.0
    %v1133 = vmax.f32 %v871, 0.0
    %v1134 = vmax.f32 %v876, 0.0
    %v1135 = vmax.f32 %v881, 0.0
    %v1136 = vmax.f32 %v886, 0.0
    %v1137 = vmax.f32 %v891, 0.0
    %v1138 = vmax.f32 %v896, 0.0
    %v1139 = vmax.f32 %v901, 0.0
    %v1140 = vmax.f32 %v906, 0.0
    %v1141 = vmax.f32 %v911, 0.0
    %v1142 = vmax.f32 %v916, 0.0
    %v1143 = vmax.f32 %v921, 0.0
    %v1144 = vmax.f32 %v926, 0.0
    %v1145 = vmax.f32 %v931, 0.0
    %v1146 = vmax.f32 %v936, 0.0
    %v1147 = vmax.f32 %v941, 0.0
    %v1148 = vmax.f32 %v946, 0.0
    %v1149 = vmax.f32 %v951, 0.0
    %v1150 = vmax.f32 %v956, 0.0
    %v1151 = vmax.f32 %v961, 0.0
    %v1152 = vmax.f32 %v966, 0.0
    %v1153 = vmax.f32 %v971, 0.0
    %v1154 = vmax.f32 %v976, 0.0
    %v1155 = vmax.f32 %v981, 0.0
    %v1156 = vmax.f32 %v986, 0.0
    %v1157 = vmax.f32 %v991, 0.0
    %v1158 = vmax.f32 %v996, 0.0
    %v1159 = vmax.f32 %v1001, 0.0
    %v1160 = vmax.f32 %v1006, 0.0
    %v1161 = vmax.f32 %v1011, 0.0
    %v1162 = vmax.f32 %v1016, 0.0
    %v1163 = vmax.f32 %v1021, 0.0
    %v1164 = vmax.f32 %v1026, 0.0
    %v1165 = vmax.f32 %v1031, 0.0
    %v1166 = vmax.f32 %v1036, 0.0
    %v1167 = vmax.f32 %v1041, 0.0
    %v1168 = vmax.f32 %v1046, 0.0
    %v1169 = vmax.f32 %v1051, 0.0
    %v1170 = vmax.f32 %v1056, 0.0
    %v1171 = vmax.f32 %v1061, 0.0
    %v1172 = vmax.f32 %v1066, 0.0
    %v1173 = vmax.f32 %v1071, 0.0
    %v1174 = vmax.f32 %v1076, 0.0
    %v1175 = vmax.f32 %v1081, 0.0
    %v1176 = vmax.f32 %v1086, 0.0
    %v1177 = vmax.f32 %v1091, 0.0
    %v1178 = vmax.f32 %v1096, 0.0
    %v1179 = vmax.f32 %v1101, 0.0
    %v1180 = vmax.f32 %v1106, 0.0
    %v1181 = vmax.f32 %v1111, 0.0
    %v1182 = vmax.f32 %v1116, 0.0
    %v1183 = vld [vmem:[%s3] sm:$0xff]
    %v1184 = vld [vmem:[%s3 + $0x8] sm:$0xff]
    %v1185 = vld [vmem:[%s3 + $0x10] sm:$0xff]
    %v1186 = vld [vmem:[%s3 + $0x18] sm:$0xff]
    %v1187 = vld [vmem:[%s3 + $0x20] sm:$0xff]
    %v1188 = vld [vmem:[%s3 + $0x28] sm:$0xff]
    %v1189 = vld [vmem:[%s3 + $0x30] sm:$0xff]
    %v1190 = vld [vmem:[%s3 + $0x38] sm:$0xff]
    %v1191 = vld [vmem:[%s3 + $0x40] sm:$0xff]
    %v1192 = vld [vmem:[%s3 + $0x48] sm:$0xff]
    %v1193 = vld [vmem:[%s3 + $0x50] sm:$0xff]
    %v1194 = vld [vmem:[%s3 + $0x58] sm:$0xff]
    %v1195 = vld [vmem:[%s3 + $0x60] sm:$0xff]
    %v1196 = vld [vmem:[%s3 + $0x68] sm:$0xff]
    %v1197 = vld [vmem:[%s3 + $0x70] sm:$0xff]
    %v1198 = vld [vmem:[%s3 + $0x78] sm:$0xff]
    %v1199 = vld [vmem:[%s3 + $0x80] sm:$0xff]
    %v1200 = vld [vmem:[%s3 + $0x88] sm:$0xff]
    %v1201 = vld [vmem:[%s3 + $0x90] sm:$0xff]
    %v1202 = vld [vmem:[%s3 + $0x98] sm:$0xff]
    %v1203 = vld [vmem:[%s3 + $0xa0] sm:$0xff]
    %v1204 = vld [vmem:[%s3 + $0xa8] sm:$0xff]
    %v1205 = vld [vmem:[%s3 + $0xb0] sm:$0xff]
    %v1206 = vld [vmem:[%s3 + $0xb8] sm:$0xff]
    %v1207 = vld [vmem:[%s3 + $0xc0] sm:$0xff]
    %v1208 = vld [vmem:[%s3 + $0xc8] sm:$0xff]
    %v1209 = vld [vmem:[%s3 + $0xd0] sm:$0xff]
    %v1210 = vld [vmem:[%s3 + $0xd8] sm:$0xff]
    %v1211 = vld [vmem:[%s3 + $0xe0] sm:$0xff]
    %v1212 = vld [vmem:[%s3 + $0xe8] sm:$0xff]
    %v1213 = vld [vmem:[%s3 + $0xf0] sm:$0xff]
    %v1214 = vld [vmem:[%s3 + $0xf8] sm:$0xff]
    %v1215 = vld [vmem:[%s3 + $0x100] sm:$0xff]
    %v1216 = vld [vmem:[%s3 + $0x108] sm:$0xff]
    %v1217 = vld [vmem:[%s3 + $0x110] sm:$0xff]
    %v1218 = vld [vmem:[%s3 + $0x118] sm:$0xff]
    %v1219 = vld [vmem:[%s3 + $0x120] sm:$0xff]
    %v1220 = vld [vmem:[%s3 + $0x128] sm:$0xff]
    %v1221 = vld [vmem:[%s3 + $0x130] sm:$0xff]
    %v1222 = vld [vmem:[%s3 + $0x138] sm:$0xff]
    %v1223 = vld [vmem:[%s3 + $0x140] sm:$0xff]
    %v1224 = vld [vmem:[%s3 + $0x148] sm:$0xff]
    %v1225 = vld [vmem:[%s3 + $0x150] sm:$0xff]
    %v1226 = vld [vmem:[%s3 + $0x158] sm:$0xff]
    %v1227 = vld [vmem:[%s3 + $0x160] sm:$0xff]
    %v1228 = vld [vmem:[%s3 + $0x168] sm:$0xff]
    %v1229 = vld [vmem:[%s3 + $0x170] sm:$0xff]
    %v1230 = vld [vmem:[%s3 + $0x178] sm:$0xff]
    %v1231 = vld [vmem:[%s3 + $0x180] sm:$0xff]
    %v1232 = vld [vmem:[%s3 + $0x188] sm:$0xff]
    %v1233 = vld [vmem:[%s3 + $0x190] sm:$0xff]
    %v1234 = vld [vmem:[%s3 + $0x198] sm:$0xff]
    %v1235 = vld [vmem:[%s3 + $0x1a0] sm:$0xff]
    %v1236 = vld [vmem:[%s3 + $0x1a8] sm:$0xff]
    %v1237 = vld [vmem:[%s3 + $0x1b0] sm:$0xff]
    %v1238 = vld [vmem:[%s3 + $0x1b8] sm:$0xff]
    %v1239 = vld [vmem:[%s3 + $0x1c0] sm:$0xff]
    %v1240 = vld [vmem:[%s3 + $0x1c8] sm:$0xff]
    %v1241 = vld [vmem:[%s3 + $0x1d0] sm:$0xff]
    %v1242 = vld [vmem:[%s3 + $0x1d8] sm:$0xff]
    %v1243 = vld [vmem:[%s3 + $0x1e0] sm:$0xff]
    %v1244 = vld [vmem:[%s3 + $0x1e8] sm:$0xff]
    %v1245 = vld [vmem:[%s3 + $0x1f0] sm:$0xff]
    %v1246 = vld [vmem:[%s3 + $0x1f8] sm:$0xff]
    %v1247 = vld [vmem:[%s3 + $0x200] sm:$0xff]
    %v1248 = vld [vmem:[%s3 + $0x208] sm:$0xff]
    %v1249 = vld [vmem:[%s3 + $0x210] sm:$0xff]
    %v1250 = vld [vmem:[%s3 + $0x218] sm:$0xff]
    %v1251 = vld [vmem:[%s3 + $0x220] sm:$0xff]
    %v1252 = vld [vmem:[%s3 + $0x228] sm:$0xff]
    %v1253 = vld [vmem:[%s3 + $0x230] sm:$0xff]
    %v1254 = vld [vmem:[%s3 + $0x238] sm:$0xff]
    %v1255 = vld [vmem:[%s3 + $0x240] sm:$0xff]
    %v1256 = vld [vmem:[%s3 + $0x248] sm:$0xff]
    %v1257 = vld [vmem:[%s3 + $0x250] sm:$0xff]
    %v1258 = vld [vmem:[%s3 + $0x258] sm:$0xff]
    %v1259 = vld [vmem:[%s3 + $0x260] sm:$0xff]
    %v1260 = vld [vmem:[%s3 + $0x268] sm:$0xff]
    %v1261 = vld [vmem:[%s3 + $0x270] sm:$0xff]
    %v1262 = vld [vmem:[%s3 + $0x278] sm:$0xff]
    %v1263 = vld [vmem:[%s3 + $0x280] sm:$0xff]
    %v1264 = vld [vmem:[%s3 + $0x288] sm:$0xff]
    %v1265 = vld [vmem:[%s3 + $0x290] sm:$0xff]
    %v1266 = vld [vmem:[%s3 + $0x298] sm:$0xff]
    %v1267 = vld [vmem:[%s3 + $0x2a0] sm:$0xff]
    %v1268 = vld [vmem:[%s3 + $0x2a8] sm:$0xff]
    %v1269 = vld [vmem:[%s3 + $0x2b0] sm:$0xff]
    %v1270 = vld [vmem:[%s3 + $0x2b8] sm:$0xff]
    %v1271 = vld [vmem:[%s3 + $0x2c0] sm:$0xff]
    %v1272 = vld [vmem:[%s3 + $0x2c8] sm:$0xff]
    %v1273 = vld [vmem:[%s3 + $0x2d0] sm:$0xff]
    %v1274 = vld [vmem:[%s3 + $0x2d8] sm:$0xff]
    %v1275 = vld [vmem:[%s3 + $0x2e0] sm:$0xff]
    %v1276 = vld [vmem:[%s3 + $0x2e8] sm:$0xff]
    %v1277 = vld [vmem:[%s3 + $0x2f0] sm:$0xff]
    %v1278 = vld [vmem:[%s3 + $0x2f8] sm:$0xff]
    %v1279 = vld [vmem:[%s3 + $0x300] sm:$0xff]
    %v1280 = vld [vmem:[%s3 + $0x308] sm:$0xff]
    %v1281 = vld [vmem:[%s3 + $0x310] sm:$0xff]
    %v1282 = vld [vmem:[%s3 + $0x318] sm:$0xff]
    %v1283 = vld [vmem:[%s3 + $0x320] sm:$0xff]
    %v1284 = vld [vmem:[%s3 + $0x328] sm:$0xff]
    %v1285 = vld [vmem:[%s3 + $0x330] sm:$0xff]
    %v1286 = vld [vmem:[%s3 + $0x338] sm:$0xff]
    %v1287 = vld [vmem:[%s3 + $0x340] sm:$0xff]
    %v1288 = vld [vmem:[%s3 + $0x348] sm:$0xff]
    %v1289 = vld [vmem:[%s3 + $0x350] sm:$0xff]
    %v1290 = vld [vmem:[%s3 + $0x358] sm:$0xff]
    %v1291 = vld [vmem:[%s3 + $0x360] sm:$0xff]
    %v1292 = vld [vmem:[%s3 + $0x368] sm:$0xff]
    %v1293 = vld [vmem:[%s3 + $0x370] sm:$0xff]
    %v1294 = vld [vmem:[%s3 + $0x378] sm:$0xff]
    %v1295 = vld [vmem:[%s3 + $0x380] sm:$0xff]
    %v1296 = vld [vmem:[%s3 + $0x388] sm:$0xff]
    %v1297 = vld [vmem:[%s3 + $0x390] sm:$0xff]
    %v1298 = vld [vmem:[%s3 + $0x398] sm:$0xff]
    %v1299 = vld [vmem:[%s3 + $0x3a0] sm:$0xff]
    %v1300 = vld [vmem:[%s3 + $0x3a8] sm:$0xff]
    %v1301 = vld [vmem:[%s3 + $0x3b0] sm:$0xff]
    %v1302 = vld [vmem:[%s3 + $0x3b8] sm:$0xff]
    %v1303 = vld [vmem:[%s3 + $0x3c0] sm:$0xff]
    %v1304 = vld [vmem:[%s3 + $0x3c8] sm:$0xff]
    %v1305 = vld [vmem:[%s3 + $0x3d0] sm:$0xff]
    %v1306 = vld [vmem:[%s3 + $0x3d8] sm:$0xff]
    %v1307 = vld [vmem:[%s3 + $0x3e0] sm:$0xff]
    %v1308 = vld [vmem:[%s3 + $0x3e8] sm:$0xff]
    %v1309 = vld [vmem:[%s3 + $0x3f0] sm:$0xff]
    %v1310 = vld [vmem:[%s3 + $0x3f8] sm:$0xff]
    %v1311 = vld [vmem:[%s4] sm:$0xff]
    %v1312 = vld [vmem:[%s4 + $0x8] sm:$0xff]
    %v1313 = vld [vmem:[%s4 + $0x10] sm:$0xff]
    %v1314 = vld [vmem:[%s4 + $0x18] sm:$0xff]
    %v1315 = vld [vmem:[%s4 + $0x20] sm:$0xff]
    %v1316 = vld [vmem:[%s4 + $0x28] sm:$0xff]
    %v1317 = vld [vmem:[%s4 + $0x30] sm:$0xff]
    %v1318 = vld [vmem:[%s4 + $0x38] sm:$0xff]
    %v1319 = vld [vmem:[%s4 + $0x40] sm:$0xff]
    %v1320 = vld [vmem:[%s4 + $0x48] sm:$0xff]
    %v1321 = vld [vmem:[%s4 + $0x50] sm:$0xff]
    %v1322 = vld [vmem:[%s4 + $0x58] sm:$0xff]
    %v1323 = vld [vmem:[%s4 + $0x60] sm:$0xff]
    %v1324 = vld [vmem:[%s4 + $0x68] sm:$0xff]
    %v1325 = vld [vmem:[%s4 + $0x70] sm:$0xff]
    %v1326 = vld [vmem:[%s4 + $0x78] sm:$0xff]
    %v1327 = vld [vmem:[%s4 + $0x80] sm:$0xff]
    %v1328 = vld [vmem:[%s4 + $0x88] sm:$0xff]
    %v1329 = vld [vmem:[%s4 + $0x90] sm:$0xff]
    %v1330 = vld [vmem:[%s4 + $0x98] sm:$0xff]
    %v1331 = vld [vmem:[%s4 + $0xa0] sm:$0xff]
    %v1332 = vld [vmem:[%s4 + $0xa8] sm:$0xff]
    %v1333 = vld [vmem:[%s4 + $0xb0] sm:$0xff]
    %v1334 = vld [vmem:[%s4 + $0xb8] sm:$0xff]
    %v1335 = vld [vmem:[%s4 + $0xc0] sm:$0xff]
    %v1336 = vld [vmem:[%s4 + $0xc8] sm:$0xff]
    %v1337 = vld [vmem:[%s4 + $0xd0] sm:$0xff]
    %v1338 = vld [vmem:[%s4 + $0xd8] sm:$0xff]
    %v1339 = vld [vmem:[%s4 + $0xe0] sm:$0xff]
    %v1340 = vld [vmem:[%s4 + $0xe8] sm:$0xff]
    %v1341 = vld [vmem:[%s4 + $0xf0] sm:$0xff]
    %v1342 = vld [vmem:[%s4 + $0xf8] sm:$0xff]
    %1344 = vset.pattern.permute.xlu0 0
    %1345 = vperm.xlu0 %1344, %v1311
    %v1346 = vpop.permute.xlu0 %1345
    %1349 = vset.pattern.permute.xlu0 0
    %1350 = vperm.xlu0 %1349, %v1312
    %v1351 = vpop.permute.xlu0 %1350
    %1354 = vset.pattern.permute.xlu0 0
    %1355 = vperm.xlu0 %1354, %v1313
    %v1356 = vpop.permute.xlu0 %1355
    %1359 = vset.pattern.permute.xlu0 0
    %1360 = vperm.xlu0 %1359, %v1314
    %v1361 = vpop.permute.xlu0 %1360
    %1364 = vset.pattern.permute.xlu0 0
    %1365 = vperm.xlu0 %1364, %v1315
    %v1366 = vpop.permute.xlu0 %1365
    %1369 = vset.pattern.permute.xlu0 0
    %1370 = vperm.xlu0 %1369, %v1316
    %v1371 = vpop.permute.xlu0 %1370
    %1374 = vset.pattern.permute.xlu0 0
    %1375 = vperm.xlu0 %1374, %v1317
    %v1376 = vpop.permute.xlu0 %1375
    %1379 = vset.pattern.permute.xlu0 0
    %1380 = vperm.xlu0 %1379, %v1318
    %v1381 = vpop.permute.xlu0 %1380
    %1384 = vset.pattern.permute.xlu0 0
    %1385 = vperm.xlu0 %1384, %v1319
    %v1386 = vpop.permute.xlu0 %1385
    %1389 = vset.pattern.permute.xlu0 0
    %1390 = vperm.xlu0 %1389, %v1320
    %v1391 = vpop.permute.xlu0 %1390
    %1394 = vset.pattern.permute.xlu0 0
    %1395 = vperm.xlu0 %1394, %v1321
    %v1396 = vpop.permute.xlu0 %1395
    %1399 = vset.pattern.permute.xlu0 0
    %1400 = vperm.xlu0 %1399, %v1322
    %v1401 = vpop.permute.xlu0 %1400
    %1404 = vset.pattern.permute.xlu0 0
    %1405 = vperm.xlu0 %1404, %v1323
    %v1406 = vpop.permute.xlu0 %1405
    %1409 = vset.pattern.permute.xlu0 0
    %1410 = vperm.xlu0 %1409, %v1324
    %v1411 = vpop.permute.xlu0 %1410
    %1414 = vset.pattern.permute.xlu0 0
    %1415 = vperm.xlu0 %1414, %v1325
    %v1416 = vpop.permute.xlu0 %1415
    %1419 = vset.pattern.permute.xlu0 0
    %1420 = vperm.xlu0 %1419, %v1326
    %v1421 = vpop.permute.xlu0 %1420
    %1424 = vset.pattern.permute.xlu0 0
    %1425 = vperm.xlu0 %1424, %v1327
    %v1426 = vpop.permute.xlu0 %1425
    %1429 = vset.pattern.permute.xlu0 0
    %1430 = vperm.xlu0 %1429, %v1328
    %v1431 = vpop.permute.xlu0 %1430
    %1434 = vset.pattern.permute.xlu0 0
    %1435 = vperm.xlu0 %1434, %v1329
    %v1436 = vpop.permute.xlu0 %1435
    %1439 = vset.pattern.permute.xlu0 0
    %1440 = vperm.xlu0 %1439, %v1330
    %v1441 = vpop.permute.xlu0 %1440
    %1444 = vset.pattern.permute.xlu0 0
    %1445 = vperm.xlu0 %1444, %v1331
    %v1446 = vpop.permute.xlu0 %1445
    %1449 = vset.pattern.permute.xlu0 0
    %1450 = vperm.xlu0 %1449, %v1332
    %v1451 = vpop.permute.xlu0 %1450
    %1454 = vset.pattern.permute.xlu0 0
    %1455 = vperm.xlu0 %1454, %v1333
    %v1456 = vpop.permute.xlu0 %1455
    %1459 = vset.pattern.permute.xlu0 0
    %1460 = vperm.xlu0 %1459, %v1334
    %v1461 = vpop.permute.xlu0 %1460
    %1464 = vset.pattern.permute.xlu0 0
    %1465 = vperm.xlu0 %1464, %v1335
    %v1466 = vpop.permute.xlu0 %1465
    %1469 = vset.pattern.permute.xlu0 0
    %1470 = vperm.xlu0 %1469, %v1336
    %v1471 = vpop.permute.xlu0 %1470
    %1474 = vset.pattern.permute.xlu0 0
    %1475 = vperm.xlu0 %1474, %v1337
    %v1476 = vpop.permute.xlu0 %1475
    %1479 = vset.pattern.permute.xlu0 0
    %1480 = vperm.xlu0 %1479, %v1338
    %v1481 = vpop.permute.xlu0 %1480
    %1484 = vset.pattern.permute.xlu0 0
    %1485 = vperm.xlu0 %1484, %v1339
    %v1486 = vpop.permute.xlu0 %1485
    %1489 = vset.pattern.permute.xlu0 0
    %1490 = vperm.xlu0 %1489, %v1340
    %v1491 = vpop.permute.xlu0 %1490
    %1494 = vset.pattern.permute.xlu0 0
    %1495 = vperm.xlu0 %1494, %v1341
    %v1496 = vpop.permute.xlu0 %1495
    %1499 = vset.pattern.permute.xlu0 0
    %1500 = vperm.xlu0 %1499, %v1342
    %v1501 = vpop.permute.xlu0 %1500
    %1503 = vmatprep.subr.mxu0 0.0
    %1504 = vmatpush1.msra.mxu0 %v1134
    %1505 = vmatprep.subr.mxu0 0.0
    %1506 = vmatpush1.msra.mxu0 %v1133
    %1507 = vmatprep.subr.mxu0 0.0
    %1508 = vmatpush1.msra.mxu0 %v1132
    %1509 = vmatprep.subr.mxu0 0.0
    %1510 = vmatpush1.msra.mxu0 %v1131
    %1511 = vmatprep.subr.mxu0 0.0
    %1512 = vmatpush1.msra.mxu0 %v1130
    %1513 = vmatprep.subr.mxu0 0.0
    %1514 = vmatpush1.msra.mxu0 %v1129
    %1515 = vmatprep.subr.mxu0 0.0
    %1516 = vmatpush1.msra.mxu0 %v1128
    %1517 = vmatprep.subr.mxu0 0.0
    %1518 = vmatpush1.msra.mxu0 %v1127
    %1519 = vmatprep.subr.mxu0 0.0
    %1520 = vmatpush1.msra.mxu0 %v1126
    %1521 = vmatprep.subr.mxu0 0.0
    %1522 = vmatpush1.msra.mxu0 %v1125
    %1523 = vmatprep.subr.mxu0 0.0
    %1524 = vmatpush1.msra.mxu0 %v1124
    %1525 = vmatprep.subr.mxu0 0.0
    %1526 = vmatpush1.msra.mxu0 %v1123
    %1527 = vmatprep.subr.mxu0 0.0
    %1528 = vmatpush1.msra.mxu0 %v1122
    %1529 = vmatprep.subr.mxu0 0.0
    %1530 = vmatpush1.msra.mxu0 %v1121
    %1531 = vmatprep.subr.mxu0 0.0
    %1532 = vmatpush1.msra.mxu0 %v1120
    %1533 = vmatprep.subr.mxu0 0.0
    %1534 = vmatpush1.msra.mxu0 %v1119
    %1535 = vmatprep.subr.mxu0 0.0
    %1536 = vmatpush2.msra.mxu0 %v1150
    %1537 = vmatprep.subr.mxu0 0.0
    %1538 = vmatpush2.msra.mxu0 %v1149
    %1539 = vmatprep.subr.mxu0 0.0
    %1540 = vmatpush2.msra.mxu0 %v1148
    %1541 = vmatprep.subr.mxu0 0.0
    %1542 = vmatpush2.msra.mxu0 %v1147
    %1543 = vmatprep.subr.mxu0 0.0
    %1544 = vmatpush2.msra.mxu0 %v1146
    %1545 = vmatprep.subr.mxu0 0.0
    %1546 = vmatpush2.msra.mxu0 %v1145
    %1547 = vmatprep.subr.mxu0 0.0
    %1548 = vmatpush2.msra.mxu0 %v1144
    %1549 = vmatprep.subr.mxu0 0.0
    %1550 = vmatpush2.msra.mxu0 %v1143
    %1551 = vmatprep.subr.mxu0 0.0
    %1552 = vmatpush2.msra.mxu0 %v1142
    %1553 = vmatprep.subr.mxu0 0.0
    %1554 = vmatpush2.msra.mxu0 %v1141
    %1555 = vmatprep.subr.mxu0 0.0
    %1556 = vmatpush2.msra.mxu0 %v1140
    %1557 = vmatprep.subr.mxu0 0.0
    %1558 = vmatpush2.msra.mxu0 %v1139
    %1559 = vmatprep.subr.mxu0 0.0
    %1560 = vmatpush2.msra.mxu0 %v1138
    %1561 = vmatprep.subr.mxu0 0.0
    %1562 = vmatpush2.msra.mxu0 %v1137
    %1563 = vmatprep.subr.mxu0 0.0
    %1564 = vmatpush2.msra.mxu0 %v1136
    %1565 = vmatprep.subr.mxu0 0.0
    %1566 = vmatpush2.msra.mxu0 %v1135
    %1567 = vmatprep.mubr.f32.mxu0 %v1184
    %1568 = vmatmul.mubr.f32.gmra.mxu0 %v1183
    %v1569 = vpop.f32.mrf.mxu0
    %v1570 = vadd.f32 %v1346, %v1569
    %v1571 = vpop.f32.mrf.mxu0
    %1572 = vmatprep.mubr.f32.mxu0 %v1188
    %1573 = vmatmul.mubr.f32.gmra.mxu0 %v1187
    %v1574 = vpop.f32.mrf.mxu0
    %v1575 = vadd.f32 %v1351, %v1574
    %v1576 = vpop.f32.mrf.mxu0
    %1577 = vmatprep.mubr.f32.mxu0 %v1192
    %1578 = vmatmul.mubr.f32.gmra.mxu0 %v1191
    %v1579 = vpop.f32.mrf.mxu0
    %v1580 = vadd.f32 %v1356, %v1579
    %v1581 = vpop.f32.mrf.mxu0
    %1582 = vmatprep.mubr.f32.mxu0 %v1196
    %1583 = vmatmul.mubr.f32.gmra.mxu0 %v1195
    %v1584 = vpop.f32.mrf.mxu0
    %v1585 = vadd.f32 %v1361, %v1584
    %v1586 = vpop.f32.mrf.mxu0
    %1587 = vmatprep.mubr.f32.mxu0 %v1200
    %1588 = vmatmul.mubr.f32.gmra.mxu0 %v1199
    %v1589 = vpop.f32.mrf.mxu0
    %v1590 = vadd.f32 %v1366, %v1589
    %v1591 = vpop.f32.mrf.mxu0
    %1592 = vmatprep.mubr.f32.mxu0 %v1204
    %1593 = vmatmul.mubr.f32.gmra.mxu0 %v1203
    %v1594 = vpop.f32.mrf.mxu0
    %v1595 = vadd.f32 %v1371, %v1594
    %v1596 = vpop.f32.mrf.mxu0
    %1597 = vmatprep.mubr.f32.mxu0 %v1208
    %1598 = vmatmul.mubr.f32.gmra.mxu0 %v1207
    %v1599 = vpop.f32.mrf.mxu0
    %v1600 = vadd.f32 %v1376, %v1599
    %v1601 = vpop.f32.mrf.mxu0
    %1602 = vmatprep.mubr.f32.mxu0 %v1212
    %1603 = vmatmul.mubr.f32.gmra.mxu0 %v1211
    %v1604 = vpop.f32.mrf.mxu0
    %v1605 = vadd.f32 %v1381, %v1604
    %v1606 = vpop.f32.mrf.mxu0
    %1607 = vmatprep.mubr.f32.mxu0 %v1216
    %1608 = vmatmul.mubr.f32.gmra.mxu0 %v1215
    %v1609 = vpop.f32.mrf.mxu0
    %v1610 = vadd.f32 %v1386, %v1609
    %v1611 = vpop.f32.mrf.mxu0
    %1612 = vmatprep.mubr.f32.mxu0 %v1220
    %1613 = vmatmul.mubr.f32.gmra.mxu0 %v1219
    %v1614 = vpop.f32.mrf.mxu0
    %v1615 = vadd.f32 %v1391, %v1614
    %v1616 = vpop.f32.mrf.mxu0
    %1617 = vmatprep.mubr.f32.mxu0 %v1224
    %1618 = vmatmul.mubr.f32.gmra.mxu0 %v1223
    %v1619 = vpop.f32.mrf.mxu0
    %v1620 = vadd.f32 %v1396, %v1619
    %v1621 = vpop.f32.mrf.mxu0
    %1622 = vmatprep.mubr.f32.mxu0 %v1228
    %1623 = vmatmul.mubr.f32.gmra.mxu0 %v1227
    %v1624 = vpop.f32.mrf.mxu0
    %v1625 = vadd.f32 %v1401, %v1624
    %v1626 = vpop.f32.mrf.mxu0
    %1627 = vmatprep.mubr.f32.mxu0 %v1232
    %1628 = vmatmul.mubr.f32.gmra.mxu0 %v1231
    %v1629 = vpop.f32.mrf.mxu0
    %v1630 = vadd.f32 %v1406, %v1629
    %v1631 = vpop.f32.mrf.mxu0
    %1632 = vmatprep.mubr.f32.mxu0 %v1236
    %1633 = vmatmul.mubr.f32.gmra.mxu0 %v1235
    %v1634 = vpop.f32.mrf.mxu0
    %v1635 = vadd.f32 %v1411, %v1634
    %v1636 = vpop.f32.mrf.mxu0
    %1637 = vmatprep.mubr.f32.mxu0 %v1240
    %1638 = vmatmul.mubr.f32.gmra.mxu0 %v1239
    %v1639 = vpop.f32.mrf.mxu0
    %v1640 = vadd.f32 %v1416, %v1639
    %v1641 = vpop.f32.mrf.mxu0
    %1642 = vmatprep.mubr.f32.mxu0 %v1244
    %1643 = vmatmul.mubr.f32.gmra.mxu0 %v1243
    %v1644 = vpop.f32.mrf.mxu0
    %v1645 = vadd.f32 %v1421, %v1644
    %v1646 = vpop.f32.mrf.mxu0
    %1647 = vmatprep.mubr.f32.mxu0 %v1248
    %1648 = vmatmul.mubr.f32.gmra.mxu0 %v1247
    %v1649 = vpop.f32.mrf.mxu0
    %v1650 = vadd.f32 %v1426, %v1649
    %v1651 = vpop.f32.mrf.mxu0
    %1652 = vmatprep.mubr.f32.mxu0 %v1252
    %1653 = vmatmul.mubr.f32.gmra.mxu0 %v1251
    %v1654 = vpop.f32.mrf.mxu0
    %v1655 = vadd.f32 %v1431, %v1654
    %v1656 = vpop.f32.mrf.mxu0
    %1657 = vmatprep.mubr.f32.mxu0 %v1256
    %1658 = vmatmul.mubr.f32.gmra.mxu0 %v1255
    %v1659 = vpop.f32.mrf.mxu0
    %v1660 = vadd.f32 %v1436, %v1659
    %v1661 = vpop.f32.mrf.mxu0
    %1662 = vmatprep.mubr.f32.mxu0 %v1260
    %1663 = vmatmul.mubr.f32.gmra.mxu0 %v1259
    %v1664 = vpop.f32.mrf.mxu0
    %v1665 = vadd.f32 %v1441, %v1664
    %v1666 = vpop.f32.mrf.mxu0
    %1667 = vmatprep.mubr.f32.mxu0 %v1264
    %1668 = vmatmul.mubr.f32.gmra.mxu0 %v1263
    %v1669 = vpop.f32.mrf.mxu0
    %v1670 = vadd.f32 %v1446, %v1669
    %v1671 = vpop.f32.mrf.mxu0
    %1672 = vmatprep.mubr.f32.mxu0 %v1268
    %1673 = vmatmul.mubr.f32.gmra.mxu0 %v1267
    %v1674 = vpop.f32.mrf.mxu0
    %v1675 = vadd.f32 %v1451, %v1674
    %v1676 = vpop.f32.mrf.mxu0
    %1677 = vmatprep.mubr.f32.mxu0 %v1272
    %1678 = vmatmul.mubr.f32.gmra.mxu0 %v1271
    %v1679 = vpop.f32.mrf.mxu0
    %v1680 = vadd.f32 %v1456, %v1679
    %v1681 = vpop.f32.mrf.mxu0
    %1682 = vmatprep.mubr.f32.mxu0 %v1276
    %1683 = vmatmul.mubr.f32.gmra.mxu0 %v1275
    %v1684 = vpop.f32.mrf.mxu0
    %v1685 = vadd.f32 %v1461, %v1684
    %v1686 = vpop.f32.mrf.mxu0
    %1687 = vmatprep.mubr.f32.mxu0 %v1280
    %1688 = vmatmul.mubr.f32.gmra.mxu0 %v1279
    %v1689 = vpop.f32.mrf.mxu0
    %v1690 = vadd.f32 %v1466, %v1689
    %v1691 = vpop.f32.mrf.mxu0
    %1692 = vmatprep.mubr.f32.mxu0 %v1284
    %1693 = vmatmul.mubr.f32.gmra.mxu0 %v1283
    %v1694 = vpop.f32.mrf.mxu0
    %v1695 = vadd.f32 %v1471, %v1694
    %v1696 = vpop.f32.mrf.mxu0
    %1697 = vmatprep.mubr.f32.mxu0 %v1288
    %1698 = vmatmul.mubr.f32.gmra.mxu0 %v1287
    %v1699 = vpop.f32.mrf.mxu0
    %v1700 = vadd.f32 %v1476, %v1699
    %v1701 = vpop.f32.mrf.mxu0
    %1702 = vmatprep.mubr.f32.mxu0 %v1292
    %1703 = vmatmul.mubr.f32.gmra.mxu0 %v1291
    %v1704 = vpop.f32.mrf.mxu0
    %v1705 = vadd.f32 %v1481, %v1704
    %v1706 = vpop.f32.mrf.mxu0
    %1707 = vmatprep.mubr.f32.mxu0 %v1296
    %1708 = vmatmul.mubr.f32.gmra.mxu0 %v1295
    %v1709 = vpop.f32.mrf.mxu0
    %v1710 = vadd.f32 %v1486, %v1709
    %v1711 = vpop.f32.mrf.mxu0
    %1712 = vmatprep.mubr.f32.mxu0 %v1300
    %1713 = vmatmul.mubr.f32.gmra.mxu0 %v1299
    %v1714 = vpop.f32.mrf.mxu0
    %v1715 = vadd.f32 %v1491, %v1714
    %v1716 = vpop.f32.mrf.mxu0
    %1717 = vmatprep.mubr.f32.mxu0 %v1304
    %1718 = vmatmul.mubr.f32.gmra.mxu0 %v1303
    %v1719 = vpop.f32.mrf.mxu0
    %v1720 = vadd.f32 %v1496, %v1719
    %v1721 = vpop.f32.mrf.mxu0
    %1722 = vmatprep.mubr.f32.mxu0 %v1308
    %1723 = vmatmul.mubr.f32.gmra.mxu0 %v1307
    %v1724 = vpop.f32.mrf.mxu0
    %v1725 = vadd.f32 %v1501, %v1724
    %v1726 = vpop.f32.mrf.mxu0
    %1727 = vdwg.mxu0
    %1728 = vmatprep.subr.mxu0 0.0
    %1729 = vmatpush1.msra.mxu0 %v1166
    %1730 = vmatprep.subr.mxu0 0.0
    %1731 = vmatpush1.msra.mxu0 %v1165
    %1732 = vmatprep.subr.mxu0 0.0
    %1733 = vmatpush1.msra.mxu0 %v1164
    %1734 = vmatprep.subr.mxu0 0.0
    %1735 = vmatpush1.msra.mxu0 %v1163
    %1736 = vmatprep.subr.mxu0 0.0
    %1737 = vmatpush1.msra.mxu0 %v1162
    %1738 = vmatprep.subr.mxu0 0.0
    %1739 = vmatpush1.msra.mxu0 %v1161
    %1740 = vmatprep.subr.mxu0 0.0
    %1741 = vmatpush1.msra.mxu0 %v1160
    %1742 = vmatprep.subr.mxu0 0.0
    %1743 = vmatpush1.msra.mxu0 %v1159
    %1744 = vmatprep.subr.mxu0 0.0
    %1745 = vmatpush1.msra.mxu0 %v1158
    %1746 = vmatprep.subr.mxu0 0.0
    %1747 = vmatpush1.msra.mxu0 %v1157
    %1748 = vmatprep.subr.mxu0 0.0
    %1749 = vmatpush1.msra.mxu0 %v1156
    %1750 = vmatprep.subr.mxu0 0.0
    %1751 = vmatpush1.msra.mxu0 %v1155
    %1752 = vmatprep.subr.mxu0 0.0
    %1753 = vmatpush1.msra.mxu0 %v1154
    %1754 = vmatprep.subr.mxu0 0.0
    %1755 = vmatpush1.msra.mxu0 %v1153
    %1756 = vmatprep.subr.mxu0 0.0
    %1757 = vmatpush1.msra.mxu0 %v1152
    %1758 = vmatprep.subr.mxu0 0.0
    %1759 = vmatpush1.msra.mxu0 %v1151
    %1760 = vmatprep.subr.mxu0 0.0
    %1761 = vmatpush2.msra.mxu0 %v1182
    %1762 = vmatprep.subr.mxu0 0.0
    %1763 = vmatpush2.msra.mxu0 %v1181
    %1764 = vmatprep.subr.mxu0 0.0
    %1765 = vmatpush2.msra.mxu0 %v1180
    %1766 = vmatprep.subr.mxu0 0.0
    %1767 = vmatpush2.msra.mxu0 %v1179
    %1768 = vmatprep.subr.mxu0 0.0
    %1769 = vmatpush2.msra.mxu0 %v1178
    %1770 = vmatprep.subr.mxu0 0.0
    %1771 = vmatpush2.msra.mxu0 %v1177
    %1772 = vmatprep.subr.mxu0 0.0
    %1773 = vmatpush2.msra.mxu0 %v1176
    %1774 = vmatprep.subr.mxu0 0.0
    %1775 = vmatpush2.msra.mxu0 %v1175
    %1776 = vmatprep.subr.mxu0 0.0
    %1777 = vmatpush2.msra.mxu0 %v1174
    %1778 = vmatprep.subr.mxu0 0.0
    %1779 = vmatpush2.msra.mxu0 %v1173
    %1780 = vmatprep.subr.mxu0 0.0
    %1781 = vmatpush2.msra.mxu0 %v1172
    %1782 = vmatprep.subr.mxu0 0.0
    %1783 = vmatpush2.msra.mxu0 %v1171
    %1784 = vmatprep.subr.mxu0 0.0
    %1785 = vmatpush2.msra.mxu0 %v1170
    %1786 = vmatprep.subr.mxu0 0.0
    %1787 = vmatpush2.msra.mxu0 %v1169
    %1788 = vmatprep.subr.mxu0 0.0
    %1789 = vmatpush2.msra.mxu0 %v1168
    %1790 = vmatprep.subr.mxu0 0.0
    %1791 = vmatpush2.msra.mxu0 %v1167
    %1792 = vmatprep.mubr.f32.mxu0 %v1186
    %1793 = vmatmul.mubr.f32.gmra.mxu0 %v1185
    %v1794 = vpop.f32.mrf.mxu0
    %v1795 = vadd.f32 %v1570, %v1794
    %v1796 = vpop.f32.mrf.mxu0
    %1797 = vmatprep.mubr.f32.mxu0 %v1190
    %1798 = vmatmul.mubr.f32.gmra.mxu0 %v1189
    %v1799 = vpop.f32.mrf.mxu0
    %v1800 = vadd.f32 %v1575, %v1799
    %v1801 = vpop.f32.mrf.mxu0
    %1802 = vmatprep.mubr.f32.mxu0 %v1194
    %1803 = vmatmul.mubr.f32.gmra.mxu0 %v1193
    %v1804 = vpop.f32.mrf.mxu0
    %v1805 = vadd.f32 %v1580, %v1804
    %v1806 = vpop.f32.mrf.mxu0
    %1807 = vmatprep.mubr.f32.mxu0 %v1198
    %1808 = vmatmul.mubr.f32.gmra.mxu0 %v1197
    %v1809 = vpop.f32.mrf.mxu0
    %v1810 = vadd.f32 %v1585, %v1809
    %v1811 = vpop.f32.mrf.mxu0
    %1812 = vmatprep.mubr.f32.mxu0 %v1202
    %1813 = vmatmul.mubr.f32.gmra.mxu0 %v1201
    %v1814 = vpop.f32.mrf.mxu0
    %v1815 = vadd.f32 %v1590, %v1814
    %v1816 = vpop.f32.mrf.mxu0
    %1817 = vmatprep.mubr.f32.mxu0 %v1206
    %1818 = vmatmul.mubr.f32.gmra.mxu0 %v1205
    %v1819 = vpop.f32.mrf.mxu0
    %v1820 = vadd.f32 %v1595, %v1819
    %v1821 = vpop.f32.mrf.mxu0
    %1822 = vmatprep.mubr.f32.mxu0 %v1210
    %1823 = vmatmul.mubr.f32.gmra.mxu0 %v1209
    %v1824 = vpop.f32.mrf.mxu0
    %v1825 = vadd.f32 %v1600, %v1824
    %v1826 = vpop.f32.mrf.mxu0
    %1827 = vmatprep.mubr.f32.mxu0 %v1214
    %1828 = vmatmul.mubr.f32.gmra.mxu0 %v1213
    %v1829 = vpop.f32.mrf.mxu0
    %v1830 = vadd.f32 %v1605, %v1829
    %v1831 = vpop.f32.mrf.mxu0
    %1832 = vmatprep.mubr.f32.mxu0 %v1218
    %1833 = vmatmul.mubr.f32.gmra.mxu0 %v1217
    %v1834 = vpop.f32.mrf.mxu0
    %v1835 = vadd.f32 %v1610, %v1834
    %v1836 = vpop.f32.mrf.mxu0
    %1837 = vmatprep.mubr.f32.mxu0 %v1222
    %1838 = vmatmul.mubr.f32.gmra.mxu0 %v1221
    %v1839 = vpop.f32.mrf.mxu0
    %v1840 = vadd.f32 %v1615, %v1839
    %v1841 = vpop.f32.mrf.mxu0
    %1842 = vmatprep.mubr.f32.mxu0 %v1226
    %1843 = vmatmul.mubr.f32.gmra.mxu0 %v1225
    %v1844 = vpop.f32.mrf.mxu0
    %v1845 = vadd.f32 %v1620, %v1844
    %v1846 = vpop.f32.mrf.mxu0
    %1847 = vmatprep.mubr.f32.mxu0 %v1230
    %1848 = vmatmul.mubr.f32.gmra.mxu0 %v1229
    %v1849 = vpop.f32.mrf.mxu0
    %v1850 = vadd.f32 %v1625, %v1849
    %v1851 = vpop.f32.mrf.mxu0
    %1852 = vmatprep.mubr.f32.mxu0 %v1234
    %1853 = vmatmul.mubr.f32.gmra.mxu0 %v1233
    %v1854 = vpop.f32.mrf.mxu0
    %v1855 = vadd.f32 %v1630, %v1854
    %v1856 = vpop.f32.mrf.mxu0
    %1857 = vmatprep.mubr.f32.mxu0 %v1238
    %1858 = vmatmul.mubr.f32.gmra.mxu0 %v1237
    %v1859 = vpop.f32.mrf.mxu0
    %v1860 = vadd.f32 %v1635, %v1859
    %v1861 = vpop.f32.mrf.mxu0
    %1862 = vmatprep.mubr.f32.mxu0 %v1242
    %1863 = vmatmul.mubr.f32.gmra.mxu0 %v1241
    %v1864 = vpop.f32.mrf.mxu0
    %v1865 = vadd.f32 %v1640, %v1864
    %v1866 = vpop.f32.mrf.mxu0
    %1867 = vmatprep.mubr.f32.mxu0 %v1246
    %1868 = vmatmul.mubr.f32.gmra.mxu0 %v1245
    %v1869 = vpop.f32.mrf.mxu0
    %v1870 = vadd.f32 %v1645, %v1869
    %v1871 = vpop.f32.mrf.mxu0
    %1872 = vmatprep.mubr.f32.mxu0 %v1250
    %1873 = vmatmul.mubr.f32.gmra.mxu0 %v1249
    %v1874 = vpop.f32.mrf.mxu0
    %v1875 = vadd.f32 %v1650, %v1874
    %v1876 = vpop.f32.mrf.mxu0
    %1877 = vmatprep.mubr.f32.mxu0 %v1254
    %1878 = vmatmul.mubr.f32.gmra.mxu0 %v1253
    %v1879 = vpop.f32.mrf.mxu0
    %v1880 = vadd.f32 %v1655, %v1879
    %v1881 = vpop.f32.mrf.mxu0
    %1882 = vmatprep.mubr.f32.mxu0 %v1258
    %1883 = vmatmul.mubr.f32.gmra.mxu0 %v1257
    %v1884 = vpop.f32.mrf.mxu0
    %v1885 = vadd.f32 %v1660, %v1884
    %v1886 = vpop.f32.mrf.mxu0
    %1887 = vmatprep.mubr.f32.mxu0 %v1262
    %1888 = vmatmul.mubr.f32.gmra.mxu0 %v1261
    %v1889 = vpop.f32.mrf.mxu0
    %v1890 = vadd.f32 %v1665, %v1889
    %v1891 = vpop.f32.mrf.mxu0
    %1892 = vmatprep.mubr.f32.mxu0 %v1266
    %1893 = vmatmul.mubr.f32.gmra.mxu0 %v1265
    %v1894 = vpop.f32.mrf.mxu0
    %v1895 = vadd.f32 %v1670, %v1894
    %v1896 = vpop.f32.mrf.mxu0
    %1897 = vmatprep.mubr.f32.mxu0 %v1270
    %1898 = vmatmul.mubr.f32.gmra.mxu0 %v1269
    %v1899 = vpop.f32.mrf.mxu0
    %v1900 = vadd.f32 %v1675, %v1899
    %v1901 = vpop.f32.mrf.mxu0
    %1902 = vmatprep.mubr.f32.mxu0 %v1274
    %1903 = vmatmul.mubr.f32.gmra.mxu0 %v1273
    %v1904 = vpop.f32.mrf.mxu0
    %v1905 = vadd.f32 %v1680, %v1904
    %v1906 = vpop.f32.mrf.mxu0
    %1907 = vmatprep.mubr.f32.mxu0 %v1278
    %1908 = vmatmul.mubr.f32.gmra.mxu0 %v1277
    %v1909 = vpop.f32.mrf.mxu0
    %v1910 = vadd.f32 %v1685, %v1909
    %v1911 = vpop.f32.mrf.mxu0
    %1912 = vmatprep.mubr.f32.mxu0 %v1282
    %1913 = vmatmul.mubr.f32.gmra.mxu0 %v1281
    %v1914 = vpop.f32.mrf.mxu0
    %v1915 = vadd.f32 %v1690, %v1914
    %v1916 = vpop.f32.mrf.mxu0
    %1917 = vmatprep.mubr.f32.mxu0 %v1286
    %1918 = vmatmul.mubr.f32.gmra.mxu0 %v1285
    %v1919 = vpop.f32.mrf.mxu0
    %v1920 = vadd.f32 %v1695, %v1919
    %v1921 = vpop.f32.mrf.mxu0
    %1922 = vmatprep.mubr.f32.mxu0 %v1290
    %1923 = vmatmul.mubr.f32.gmra.mxu0 %v1289
    %v1924 = vpop.f32.mrf.mxu0
    %v1925 = vadd.f32 %v1700, %v1924
    %v1926 = vpop.f32.mrf.mxu0
    %1927 = vmatprep.mubr.f32.mxu0 %v1294
    %1928 = vmatmul.mubr.f32.gmra.mxu0 %v1293
    %v1929 = vpop.f32.mrf.mxu0
    %v1930 = vadd.f32 %v1705, %v1929
    %v1931 = vpop.f32.mrf.mxu0
    %1932 = vmatprep.mubr.f32.mxu0 %v1298
    %1933 = vmatmul.mubr.f32.gmra.mxu0 %v1297
    %v1934 = vpop.f32.mrf.mxu0
    %v1935 = vadd.f32 %v1710, %v1934
    %v1936 = vpop.f32.mrf.mxu0
    %1937 = vmatprep.mubr.f32.mxu0 %v1302
    %1938 = vmatmul.mubr.f32.gmra.mxu0 %v1301
    %v1939 = vpop.f32.mrf.mxu0
    %v1940 = vadd.f32 %v1715, %v1939
    %v1941 = vpop.f32.mrf.mxu0
    %1942 = vmatprep.mubr.f32.mxu0 %v1306
    %1943 = vmatmul.mubr.f32.gmra.mxu0 %v1305
    %v1944 = vpop.f32.mrf.mxu0
    %v1945 = vadd.f32 %v1720, %v1944
    %v1946 = vpop.f32.mrf.mxu0
    %1947 = vmatprep.mubr.f32.mxu0 %v1310
    %1948 = vmatmul.mubr.f32.gmra.mxu0 %v1309
    %v1949 = vpop.f32.mrf.mxu0
    %v1950 = vadd.f32 %v1725, %v1949
    %v1951 = vpop.f32.mrf.mxu0
    %1952 = vdwg.mxu0
    %v1953 = vmax.f32 %v1795, 0.0
    %v1954 = vmax.f32 %v1800, 0.0
    %v1955 = vmax.f32 %v1805, 0.0
    %v1956 = vmax.f32 %v1810, 0.0
    %v1957 = vmax.f32 %v1815, 0.0
    %v1958 = vmax.f32 %v1820, 0.0
    %v1959 = vmax.f32 %v1825, 0.0
    %v1960 = vmax.f32 %v1830, 0.0
    %v1961 = vmax.f32 %v1835, 0.0
    %v1962 = vmax.f32 %v1840, 0.0
    %v1963 = vmax.f32 %v1845, 0.0
    %v1964 = vmax.f32 %v1850, 0.0
    %v1965 = vmax.f32 %v1855, 0.0
    %v1966 = vmax.f32 %v1860, 0.0
    %v1967 = vmax.f32 %v1865, 0.0
    %v1968 = vmax.f32 %v1870, 0.0
    %v1969 = vmax.f32 %v1875, 0.0
    %v1970 = vmax.f32 %v1880, 0.0
    %v1971 = vmax.f32 %v1885, 0.0
    %v1972 = vmax.f32 %v1890, 0.0
    %v1973 = vmax.f32 %v1895, 0.0
    %v1974 = vmax.f32 %v1900, 0.0
    %v1975 = vmax.f32 %v1905, 0.0
    %v1976 = vmax.f32 %v1910, 0.0
    %v1977 = vmax.f32 %v1915, 0.0
    %v1978 = vmax.f32 %v1920, 0.0
    %v1979 = vmax.f32 %v1925, 0.0
    %v1980 = vmax.f32 %v1930, 0.0
    %v1981 = vmax.f32 %v1935, 0.0
    %v1982 = vmax.f32 %v1940, 0.0
    %v1983 = vmax.f32 %v1945, 0.0
    %v1984 = vmax.f32 %v1950, 0.0
    %v1985 = vld [vmem:[%s5] sm:$0x3]
    %v1986 = vld [vmem:[#allocation2] sm:$0x1]
    %1988 = vset.pattern.permute.xlu0 0
    %1989 = vperm.xlu0 %1988, %v1986
    %v1990 = vpop.permute.xlu0 %1989
    %v1992 = vlaneseq
    %v1993 = vshrl.u32 %v1992, 7
    %v1994 = vsub.s32 0, %v1993
    %v1995 = vrot.slane %v1990, %v1994
    %v1997 = vlaneseq
    %v1998 = vshrl.u32 %v1997, 7
    %v1999 = vsub.s32 0, %v1998
    %v2000 = vrot.slane %v1985, %v1999
    %v2001 = vlaneseq
    %v2002 = vshrl.u32 %v2001, 7
    %v2003 = vsub.s32 1, %v2002
    %v2004 = vrot.slane %v1985, %v2003
    %2007 = vmatprep.subr.mxu0 0.0
    %2008 = vmatpush1.msra.mxu0 %v1968
    %2009 = vmatprep.subr.mxu0 0.0
    %2010 = vmatpush1.msra.mxu0 %v1967
    %2011 = vmatprep.subr.mxu0 0.0
    %2012 = vmatpush1.msra.mxu0 %v1966
    %2013 = vmatprep.subr.mxu0 0.0
    %2014 = vmatpush1.msra.mxu0 %v1965
    %2015 = vmatprep.subr.mxu0 0.0
    %2016 = vmatpush1.msra.mxu0 %v1964
    %2017 = vmatprep.subr.mxu0 0.0
    %2018 = vmatpush1.msra.mxu0 %v1963
    %2019 = vmatprep.subr.mxu0 0.0
    %2020 = vmatpush1.msra.mxu0 %v1962
    %2021 = vmatprep.subr.mxu0 0.0
    %2022 = vmatpush1.msra.mxu0 %v1961
    %2023 = vmatprep.subr.mxu0 0.0
    %2024 = vmatpush1.msra.mxu0 %v1960
    %2025 = vmatprep.subr.mxu0 0.0
    %2026 = vmatpush1.msra.mxu0 %v1959
    %2027 = vmatprep.subr.mxu0 0.0
    %2028 = vmatpush1.msra.mxu0 %v1958
    %2029 = vmatprep.subr.mxu0 0.0
    %2030 = vmatpush1.msra.mxu0 %v1957
    %2031 = vmatprep.subr.mxu0 0.0
    %2032 = vmatpush1.msra.mxu0 %v1956
    %2033 = vmatprep.subr.mxu0 0.0
    %2034 = vmatpush1.msra.mxu0 %v1955
    %2035 = vmatprep.subr.mxu0 0.0
    %2036 = vmatpush1.msra.mxu0 %v1954
    %2037 = vmatprep.subr.mxu0 0.0
    %2038 = vmatpush1.msra.mxu0 %v1953
    %2039 = vmatprep.subr.mxu0 0.0
    %2040 = vmatpush2.msra.mxu0 %v1984
    %2041 = vmatprep.subr.mxu0 0.0
    %2042 = vmatpush2.msra.mxu0 %v1983
    %2043 = vmatprep.subr.mxu0 0.0
    %2044 = vmatpush2.msra.mxu0 %v1982
    %2045 = vmatprep.subr.mxu0 0.0
    %2046 = vmatpush2.msra.mxu0 %v1981
    %2047 = vmatprep.subr.mxu0 0.0
    %2048 = vmatpush2.msra.mxu0 %v1980
    %2049 = vmatprep.subr.mxu0 0.0
    %2050 = vmatpush2.msra.mxu0 %v1979
    %2051 = vmatprep.subr.mxu0 0.0
    %2052 = vmatpush2.msra.mxu0 %v1978
    %2053 = vmatprep.subr.mxu0 0.0
    %2054 = vmatpush2.msra.mxu0 %v1977
    %2055 = vmatprep.subr.mxu0 0.0
    %2056 = vmatpush2.msra.mxu0 %v1976
    %2057 = vmatprep.subr.mxu0 0.0
    %2058 = vmatpush2.msra.mxu0 %v1975
    %2059 = vmatprep.subr.mxu0 0.0
    %2060 = vmatpush2.msra.mxu0 %v1974
    %2061 = vmatprep.subr.mxu0 0.0
    %2062 = vmatpush2.msra.mxu0 %v1973
    %2063 = vmatprep.subr.mxu0 0.0
    %2064 = vmatpush2.msra.mxu0 %v1972
    %2065 = vmatprep.subr.mxu0 0.0
    %2066 = vmatpush2.msra.mxu0 %v1971
    %2067 = vmatprep.subr.mxu0 0.0
    %2068 = vmatpush2.msra.mxu0 %v1970
    %2069 = vmatprep.subr.mxu0 0.0
    %2070 = vmatpush2.msra.mxu0 %v1969
    %2071 = vmatprep.mubr.f32.mxu0 %v2004
    %2072 = vmatmul.mubr.f32.gmra.mxu0 %v2000
    %v2073 = vpop.f32.mrf.mxu0
    %v2074 = vadd.f32 %v1995, %v2073
    %v2075 = vpop.f32.mrf.mxu0
    %2076 = vdwg.mxu0
    %v2077 = vmax.f32 %v2074, 0.0
    %2078 = vst [vmem:[#allocation3] sm:$0x1] %v2077
    // Predicated region
    $region30: #{tpu_custom_call.1} parent=1 // pred_check
      _
    $region31: #{tpu_custom_call.1} parent=1 // pred_check_branch
      %2080 = sbr.rel (0) target = $region33
    $region32: #{tpu_custom_call.1} parent=1 // pred_region
      %s2082 = ssub.s32 16, 16
      %2083 = vsyncadd [#allocation4], %s2082
      %s2085 = sshll.u32 [#allocation3], 4
      %s2086 = int_to_ptr.vmem [resolvable:$true] %s2085
      %2088 = dma.vmem_to_hbm [thread:$0]  %s2086, 16, %s7, [#allocation4]
    $region33: #{tpu_custom_call.1} parent=1 // pred_fallthru
      _
    // Predicated region
    $region34: #{tpu_custom_call.1} parent=1 // pred_check
      _
    $region35: #{tpu_custom_call.1} parent=1 // pred_check_branch
      %2090 = sbr.rel (0) target = $region37
    $region36: #{tpu_custom_call.1} parent=1 // pred_region
      %2091 = dma.done [#allocation4], 16
    $region37: #{tpu_custom_call.1} parent=1 // pred_fallthru
      _
    %2092 = vsyncpa [#allocation4], 1

</llo_original>
